<compile_context>
chip_gen: v6e
topology: v6e:2x2x1
jax: 0.10.0
libtpu: 0.0.40
codegen_flags: <defaults>
</compile_context>

<pallas_src>
import functools

import jax
import jax.numpy as jnp
from jax.experimental import pallas as pl
from jax.experimental.pallas import tpu as pltpu

EMB_DIM = 128          # emb_dim in FragNetFineTune
N_CLASSES = 1
H1, H2, H3, H4 = 128, 256, 256, 128   # FTHead2 hidden dims (act='relu')
LANE_OUT = 128         # lane-dense padded output width (real output sliced outside)
POOL_CHUNK = 512       # one-hot column sub-chunk (bounds vreg/VMEM footprint)


def _round_up(x, m):
    return (x + m - 1) // m * m


def _fragnet_finetune_kernel(
    x_atoms_ref, x_frags_ref, atom_idx_ref, frag_idx_ref,
    w1_ref, b1_ref, w2_ref, b2_ref, w3_ref, b3_ref, w4_ref, b4_ref,
    w5_ref, b5_ref,
    out_ref,
    acc_ref,
    *, atom_tiles, frag_tiles, num_tiles,
):
    t = pl.program_id(0)
    b_pad = out_ref.shape[0]
    d = x_atoms_ref.shape[1]

    @pl.when(t == 0)
    def _():
        acc_ref[...] = jnp.zeros_like(acc_ref)

    def pool(x_ref, idx_ref, col0):
        """scatter_add of one node tile: bf16 one-hot matmul on the MXU,
        f32 accumulation, chunked over columns to keep the one-hot small."""
        tile = x_ref.shape[0]
        chunk = min(tile, POOL_CHUNK)          # tile is either <= chunk or a multiple
        n_chunks = tile // chunk

        def chunk_body(start):
            idx = idx_ref[:, pl.ds(start, chunk)]                      # (1, chunk)
            iota = jax.lax.broadcasted_iota(jnp.int32, (b_pad, chunk), 0)
            onehot = (iota == idx).astype(jnp.bfloat16)                # 0/1 exact in bf16
            x = x_ref[pl.ds(start, chunk), :]                          # (chunk, d) bf16
            acc_ref[:, col0:col0 + d] += jnp.dot(
                onehot, x, preferred_element_type=jnp.float32)

        if n_chunks == 1:
            chunk_body(0)
        else:
            def body(c, carry):
                chunk_body(pl.multiple_of(c * chunk, chunk))
                return carry
            jax.lax.fori_loop(0, n_chunks, body, 0, unroll=True)

    def do_atoms():
        pool(x_atoms_ref, atom_idx_ref, 0)

    def do_frags():
        pool(x_frags_ref, frag_idx_ref, d)

    # Atoms / frags have independent tile counts; the shorter stream's block is
    # clamped (no re-DMA) and its pooling skipped past its last tile.
    if atom_tiles == num_tiles:
        do_atoms()
    else:
        pl.when(t < atom_tiles)(do_atoms)
    if frag_tiles == num_tiles:
        do_frags()
    else:
        pl.when(t < frag_tiles)(do_frags)

    # ---- FTHead2 MLP on the last reduction step (dropout = identity in eval) ----
    @pl.when(t == num_tiles - 1)
    def _():
        def mm(x_bf16, w_ref):
            # bf16 MXU inputs, f32 accumulation.
            return jnp.dot(x_bf16, w_ref[...], preferred_element_type=jnp.float32)

        # concat(a_pool, f_pool) already lives in acc_ref[:, :d] / acc_ref[:, d:],
        # so layer 1 is a single K=2*d matmul.
        h = acc_ref[...].astype(jnp.bfloat16)                          # (b_pad, 2d)
        h = jnp.maximum(mm(h, w1_ref) + b1_ref[...], 0.0).astype(jnp.bfloat16)
        h = jnp.maximum(mm(h, w2_ref) + b2_ref[...], 0.0).astype(jnp.bfloat16)
        h = jnp.maximum(mm(h, w3_ref) + b3_ref[...], 0.0).astype(jnp.bfloat16)
        h = jnp.maximum(mm(h, w4_ref) + b4_ref[...], 0.0).astype(jnp.bfloat16)
        out_ref[...] = mm(h, w5_ref) + b5_ref[...]        # lane-dense (b_pad, 128)


def fragnet_finetune_forward(x_atoms, x_frags, atom_batch, frag_batch, params,
                             num_graphs, node_tile=2048):
    """Pads/tiles inputs and calls the fused Pallas kernel (grid over node tiles)."""
    D = x_atoms.shape[1]
    b_pad = _round_up(max(int(num_graphs), 1), 16)   # bf16 sublane packing: (16,128)

    def tiling(n):
        if n <= node_tile:
            return max(16, _round_up(n, 16)), 1        # single full-extent block
        tile = _round_up(node_tile, POOL_CHUNK)        # aligned multi-tile blocks
        return tile, pl.cdiv(n, tile)

    atom_tile, atom_tiles = tiling(x_atoms.shape[0])
    frag_tile, frag_tiles = tiling(x_frags.shape[0])
    num_tiles = max(atom_tiles, frag_tiles)

    def pad_nodes(x, idx, tile, ntiles):
        n_pad = tile * ntiles
        extra = n_pad - x.shape[0]
        # bf16 stream halves HBM traffic of the dominant node-embedding DMA;
        # the pooled sums still accumulate in f32 on the MXU.
        xp = jnp.pad(x.astype(jnp.bfloat16), ((0, extra), (0, 0)))
        # Padding rows get index == b_pad (never matches iota) -> zero contribution.
        ip = jnp.pad(idx.astype(jnp.int32), (0, extra), constant_values=b_pad)
        return xp, ip.reshape(1, -1)

    x_atoms_p, atom_idx = pad_nodes(x_atoms, atom_batch, atom_tile, atom_tiles)
    x_frags_p, frag_idx = pad_nodes(x_frags, frag_batch, frag_tile, frag_tiles)

    (w1, b1), (w2, b2), (w3, b3), (w4, b4), (w5, b5) = params
    # Lane-dense final layer: zero-pad N_CLASSES -> 128; slice outside the kernel.
    w5p = jnp.zeros((w5.shape[0], LANE_OUT), jnp.float32)
    w5p = w5p.at[:, :w5.shape[1]].set(w5.astype(jnp.float32)).astype(jnp.bfloat16)
    b5p = jnp.zeros((1, LANE_OUT), jnp.float32)
    b5p = b5p.at[:, :b5.shape[0]].set(b5.astype(jnp.float32).reshape(1, -1))

    weights = [
        w1.astype(jnp.bfloat16), b1.reshape(1, -1).astype(jnp.float32),
        w2.astype(jnp.bfloat16), b2.reshape(1, -1).astype(jnp.float32),
        w3.astype(jnp.bfloat16), b3.reshape(1, -1).astype(jnp.float32),
        w4.astype(jnp.bfloat16), b4.reshape(1, -1).astype(jnp.float32),
        w5p, b5p,
    ]

    def node_imap(ntiles):
        if ntiles == num_tiles:
            return lambda t: (t, 0)
        if ntiles == 1:
            return lambda t: (0, 0)                      # constant block: no re-DMA
        return lambda t: (jnp.minimum(t, ntiles - 1), 0)  # clamped past last tile

    def idx_imap(ntiles):
        if ntiles == num_tiles:
            return lambda t: (0, t)
        if ntiles == 1:
            return lambda t: (0, 0)
        return lambda t: (0, jnp.minimum(t, ntiles - 1))

    node_specs = [
        pl.BlockSpec((atom_tile, D), node_imap(atom_tiles)),   # x_atoms tile
        pl.BlockSpec((frag_tile, D), node_imap(frag_tiles)),   # x_frags tile
        pl.BlockSpec((1, atom_tile), idx_imap(atom_tiles)),    # atom indices tile
        pl.BlockSpec((1, frag_tile), idx_imap(frag_tiles)),    # frag indices tile
    ]
    # Weights/biases: full blocks with constant index_map -> stay VMEM-resident
    # across the node-tile reduction (no re-DMA per grid step).
    weight_specs = [pl.BlockSpec(w.shape, lambda t: (0, 0)) for w in weights]

    kernel = functools.partial(_fragnet_finetune_kernel,
                               atom_tiles=atom_tiles, frag_tiles=frag_tiles,
                               num_tiles=num_tiles)

    out_p = pl.pallas_call(
        kernel,
        out_shape=jax.ShapeDtypeStruct((b_pad, LANE_OUT), jnp.float32),
        grid_spec=pltpu.PrefetchScalarGridSpec(
            num_scalar_prefetch=0,
            grid=(num_tiles,),
            in_specs=node_specs + weight_specs,
            out_specs=pl.BlockSpec((b_pad, LANE_OUT), lambda t: (0, 0)),
            scratch_shapes=[pltpu.VMEM((b_pad, 2 * D), jnp.float32)],
        ),
        compiler_params=pltpu.CompilerParams(
            dimension_semantics=("arbitrary",)),
    )(x_atoms_p, x_frags_p, atom_idx, frag_idx, *weights)

    return out_p[:num_graphs, :N_CLASSES]


def init_fthead_params(key):
    """Deterministic init matching PyTorch nn.Linear shapes (stored as (in, out))."""
    dims = [2 * EMB_DIM, H1, H2, H3, H4, N_CLASSES]
    params = []
    for i in range(len(dims) - 1):
        key, kw, kb = jax.random.split(key, 3)
        bound = 1.0 / float(dims[i]) ** 0.5
        w = jax.random.uniform(kw, (dims[i], dims[i + 1]), jnp.float32, -bound, bound)
        b = jax.random.uniform(kb, (dims[i + 1],), jnp.float32, -bound, bound)
        params.append((w, b))
    return params


def reference_forward(x_atoms, x_frags, atom_batch, frag_batch, params, num_graphs):
    """Pure-JAX (f32) reference of the same forward pass."""
    a_pool = jax.ops.segment_sum(x_atoms, atom_batch, num_segments=num_graphs)
    f_pool = jax.ops.segment_sum(x_frags, frag_batch, num_segments=num_graphs)
    h = jnp.concatenate([a_pool, f_pool], axis=1)
    for w, b in params[:-1]:
        h = jnp.maximum(h @ w + b, 0.0)
    w, b = params[-1]
    return h @ w + b


if __name__ == "__main__":
    key = jax.random.PRNGKey(0)
    k_atoms, k_frags, k_params, k_atoms2, k_frags2 = jax.random.split(key, 5)
    params = init_fthead_params(k_params)

    # ---- Test 1: tiny graph batch (single node tile per stream) ---------------
    num_graphs = 2
    n_atoms, n_frags = 16, 8
    x_atoms = jax.random.normal(k_atoms, (n_atoms, EMB_DIM), jnp.float32)
    x_frags = jax.random.normal(k_frags, (n_frags, EMB_DIM), jnp.float32)
    atom_batch = jnp.array([0] * 8 + [1] * 8, dtype=jnp.int32)
    frag_batch = jnp.array([0] * 4 + [1] * 4, dtype=jnp.int32)

    out = fragnet_finetune_forward(x_atoms, x_frags, atom_batch, frag_batch,
                                   params, num_graphs)
    out = jax.block_until_ready(out)
    ref = reference_forward(x_atoms, x_frags, atom_batch, frag_batch,
                            params, num_graphs)
    assert out.shape == (num_graphs, N_CLASSES)
    assert jnp.allclose(out, ref, atol=5e-2, rtol=5e-2), (out, ref)

    # ---- Test 2: multi-tile atom reduction, clamped/gated frag stream,
    # ----          chunked one-hot pooling loop --------------------------------
    num_graphs2 = 3
    n_atoms2, n_frags2 = 1500, 200
    x_atoms2 = jax.random.normal(k_atoms2, (n_atoms2, EMB_DIM), jnp.float32)
    x_frags2 = jax.random.normal(k_frags2, (n_frags2, EMB_DIM), jnp.float32)
    atom_batch2 = jnp.repeat(jnp.arange(num_graphs2, dtype=jnp.int32),
                             jnp.array([500, 500, 500]),
                             total_repeat_length=n_atoms2)
    frag_batch2 = jnp.repeat(jnp.arange(num_graphs2, dtype=jnp.int32),
                             jnp.array([70, 60, 70]),
                             total_repeat_length=n_frags2)

    out2 = fragnet_finetune_forward(x_atoms2, x_frags2, atom_batch2, frag_batch2,
                                    params, num_graphs2, node_tile=1024)
    out2 = jax.block_until_ready(out2)
    ref2 = reference_forward(x_atoms2, x_frags2, atom_batch2, frag_batch2,
                             params, num_graphs2)
    assert out2.shape == (num_graphs2, N_CLASSES)
    assert jnp.allclose(out2, ref2, atol=5e-2, rtol=5e-2), (out2, ref2)

    print("KERNEL_OK")
</pallas_src>

<mosaic_0001>
module attributes {stable_mosaic.version = 11 : i64} {
  func.func @_fragnet_finetune_kernel(%arg0: i32, %arg1: memref<16x128xbf16, #tpu.memory_space<vmem>>, %arg2: memref<16x128xbf16, #tpu.memory_space<vmem>>, %arg3: memref<1x16xi32, #tpu.memory_space<vmem>>, %arg4: memref<1x16xi32, #tpu.memory_space<vmem>>, %arg5: memref<256x128xbf16, #tpu.memory_space<vmem>>, %arg6: memref<1x128xf32, #tpu.memory_space<vmem>>, %arg7: memref<128x256xbf16, #tpu.memory_space<vmem>>, %arg8: memref<1x256xf32, #tpu.memory_space<vmem>>, %arg9: memref<256x256xbf16, #tpu.memory_space<vmem>>, %arg10: memref<1x256xf32, #tpu.memory_space<vmem>>, %arg11: memref<256x128xbf16, #tpu.memory_space<vmem>>, %arg12: memref<1x128xf32, #tpu.memory_space<vmem>>, %arg13: memref<128x128xbf16, #tpu.memory_space<vmem>>, %arg14: memref<1x128xf32, #tpu.memory_space<vmem>>, %arg15: memref<16x128xf32, #tpu.memory_space<vmem>>, %arg16: memref<16x256xf32, #tpu.memory_space<vmem>>) attributes {dimension_semantics = [#tpu.dimension_semantics<arbitrary>], iteration_bounds = array<i64: 1>, scalar_prefetch = 0 : i64, scratch_operands = 1 : i64, tpu.core_type = #tpu.core_type<tc>, window_params = [{transform_indices = @transform_0, window_bounds = array<i64: 16, 128>}, {transform_indices = @transform_1, window_bounds = array<i64: 16, 128>}, {transform_indices = @transform_2, window_bounds = array<i64: 1, 16>}, {transform_indices = @transform_3, window_bounds = array<i64: 1, 16>}, {pipeline_mode = #tpu.pipeline_mode<synchronous>, transform_indices = @transform_4, window_bounds = array<i64: 256, 128>}, {pipeline_mode = #tpu.pipeline_mode<synchronous>, transform_indices = @transform_5, window_bounds = array<i64: 1, 128>}, {pipeline_mode = #tpu.pipeline_mode<synchronous>, transform_indices = @transform_6, window_bounds = array<i64: 128, 256>}, {pipeline_mode = #tpu.pipeline_mode<synchronous>, transform_indices = @transform_7, window_bounds = array<i64: 1, 256>}, {pipeline_mode = #tpu.pipeline_mode<synchronous>, transform_indices = @transform_8, window_bounds = array<i64: 256, 256>}, {pipeline_mode = #tpu.pipeline_mode<synchronous>, transform_indices = @transform_9, window_bounds = array<i64: 1, 256>}, {pipeline_mode = #tpu.pipeline_mode<synchronous>, transform_indices = @transform_10, window_bounds = array<i64: 256, 128>}, {pipeline_mode = #tpu.pipeline_mode<synchronous>, transform_indices = @transform_11, window_bounds = array<i64: 1, 128>}, {pipeline_mode = #tpu.pipeline_mode<synchronous>, transform_indices = @transform_12, window_bounds = array<i64: 128, 128>}, {pipeline_mode = #tpu.pipeline_mode<synchronous>, transform_indices = @transform_13, window_bounds = array<i64: 1, 128>}, {pipeline_mode = #tpu.pipeline_mode<synchronous>, transform_indices = @transform_14, window_bounds = array<i64: 16, 128>}]} {
    %c0_i32 = arith.constant 0 : i32
    %0 = arith.cmpi eq, %arg0, %c0_i32 : i32
    %1 = arith.extui %0 : i1 to i32
    %c0_i32_0 = arith.constant 0 : i32
    %2 = arith.cmpi ne, %1, %c0_i32_0 : i32
    scf.if %2 {
      %cst_18 = arith.constant 0.000000e+00 : f32
      %30 = vector.broadcast %cst_18 : f32 to vector<16x256xf32>
      %c0_19 = arith.constant 0 : index
      %c0_20 = arith.constant 0 : index
      %31 = vector.load %arg16[%c0_19, %c0_20] : memref<16x256xf32, #tpu.memory_space<vmem>>, vector<16x256xf32>
      tpu.vector_store %arg16[%c0_19, %c0_20], %30 {strides = array<i32>} : memref<16x256xf32, #tpu.memory_space<vmem>>, vector<16x256xf32>,
    } else {
    }
    %c0 = arith.constant 0 : index
    %c0_1 = arith.constant 0 : index
    %3 = vector.load %arg3[%c0, %c0_1] : memref<1x16xi32, #tpu.memory_space<vmem>>, vector<1x16xi32>
    %4 = tpu.iota {dimensions = array<i32: 0>} : vector<16x16xi32>
    %5 = vector.broadcast %3 : vector<1x16xi32> to vector<16x16xi32>
    %6 = arith.cmpi eq, %4, %5 : vector<16x16xi32>
    %7 = arith.extui %6 : vector<16x16xi1> to vector<16x16xi32>
    %8 = arith.sitofp %7 : vector<16x16xi32> to vector<16x16xf32>
    %9 = arith.truncf %8 : vector<16x16xf32> to vector<16x16xbf16>
    %c0_2 = arith.constant 0 : index
    %c0_3 = arith.constant 0 : index
    %10 = vector.load %arg1[%c0_2, %c0_3] : memref<16x128xbf16, #tpu.memory_space<vmem>>, vector<16x128xbf16>
    %c0_4 = arith.constant 0 : index
    %c0_5 = arith.constant 0 : index
    %11 = vector.load %arg16[%c0_4, %c0_5] : memref<16x256xf32, #tpu.memory_space<vmem>>, vector<16x128xf32>
    %cst = arith.constant dense<0.000000e+00> : vector<16x128xf32>
    %12 = tpu.matmul %9, %10, %cst {dimension_numbers = #tpu.dot_dimension_numbers<[1], [0], [0], [1], [0, 0, 1, 1], [], []>} : vector<16x16xbf16>, vector<16x128xbf16>, vector<16x128xf32> -> vector<16x128xf32>
    %13 = arith.addf %11, %12 : vector<16x128xf32>
    %c0_6 = arith.constant 0 : index
    %c0_7 = arith.constant 0 : index
    %14 = vector.load %arg16[%c0_6, %c0_7] : memref<16x256xf32, #tpu.memory_space<vmem>>, vector<16x128xf32>
    tpu.vector_store %arg16[%c0_6, %c0_7], %13 {strides = array<i32>} : memref<16x256xf32, #tpu.memory_space<vmem>>, vector<16x128xf32>,
    %c0_8 = arith.constant 0 : index
    %c0_9 = arith.constant 0 : index
    %15 = vector.load %arg4[%c0_8, %c0_9] : memref<1x16xi32, #tpu.memory_space<vmem>>, vector<1x16xi32>
    %16 = tpu.iota {dimensions = array<i32: 0>} : vector<16x16xi32>
    %17 = vector.broadcast %15 : vector<1x16xi32> to vector<16x16xi32>
    %18 = arith.cmpi eq, %16, %17 : vector<16x16xi32>
    %19 = arith.extui %18 : vector<16x16xi1> to vector<16x16xi32>
    %20 = arith.sitofp %19 : vector<16x16xi32> to vector<16x16xf32>
    %21 = arith.truncf %20 : vector<16x16xf32> to vector<16x16xbf16>
    %c0_10 = arith.constant 0 : index
    %c0_11 = arith.constant 0 : index
    %22 = vector.load %arg2[%c0_10, %c0_11] : memref<16x128xbf16, #tpu.memory_space<vmem>>, vector<16x128xbf16>
    %c0_12 = arith.constant 0 : index
    %c128 = arith.constant 128 : index
    %23 = vector.load %arg16[%c0_12, %c128] : memref<16x256xf32, #tpu.memory_space<vmem>>, vector<16x128xf32>
    %cst_13 = arith.constant dense<0.000000e+00> : vector<16x128xf32>
    %24 = tpu.matmul %21, %22, %cst_13 {dimension_numbers = #tpu.dot_dimension_numbers<[1], [0], [0], [1], [0, 0, 1, 1], [], []>} : vector<16x16xbf16>, vector<16x128xbf16>, vector<16x128xf32> -> vector<16x128xf32>
    %25 = arith.addf %23, %24 : vector<16x128xf32>
    %c0_14 = arith.constant 0 : index
    %c128_15 = arith.constant 128 : index
    %26 = vector.load %arg16[%c0_14, %c128_15] : memref<16x256xf32, #tpu.memory_space<vmem>>, vector<16x128xf32>
    tpu.vector_store %arg16[%c0_14, %c128_15], %25 {strides = array<i32>} : memref<16x256xf32, #tpu.memory_space<vmem>>, vector<16x128xf32>,
    %c0_i32_16 = arith.constant 0 : i32
    %27 = arith.cmpi eq, %arg0, %c0_i32_16 : i32
    %28 = arith.extui %27 : i1 to i32
    %c0_i32_17 = arith.constant 0 : i32
    %29 = arith.cmpi ne, %28, %c0_i32_17 : i32
    scf.if %29 {
      %c0_18 = arith.constant 0 : index
      %c0_19 = arith.constant 0 : index
      %30 = vector.load %arg16[%c0_18, %c0_19] : memref<16x256xf32, #tpu.memory_space<vmem>>, vector<16x256xf32>
      %31 = arith.truncf %30 : vector<16x256xf32> to vector<16x256xbf16>
      %c0_20 = arith.constant 0 : index
      %c0_21 = arith.constant 0 : index
      %32 = vector.load %arg5[%c0_20, %c0_21] : memref<256x128xbf16, #tpu.memory_space<vmem>>, vector<256x128xbf16>
      %cst_22 = arith.constant dense<0.000000e+00> : vector<16x128xf32>
      %33 = tpu.matmul %31, %32, %cst_22 {dimension_numbers = #tpu.dot_dimension_numbers<[1], [0], [0], [1], [0, 0, 1, 1], [], []>} : vector<16x256xbf16>, vector<256x128xbf16>, vector<16x128xf32> -> vector<16x128xf32>
      %c0_23 = arith.constant 0 : index
      %c0_24 = arith.constant 0 : index
      %34 = vector.load %arg6[%c0_23, %c0_24] : memref<1x128xf32, #tpu.memory_space<vmem>>, vector<1x128xf32>
      %35 = vector.broadcast %34 : vector<1x128xf32> to vector<16x128xf32>
      %36 = arith.addf %33, %35 : vector<16x128xf32>
      %cst_25 = arith.constant 0.000000e+00 : f32
      %37 = vector.broadcast %cst_25 : f32 to vector<16x128xf32>
      %38 = arith.maximumf %36, %37 : vector<16x128xf32>
      %39 = arith.truncf %38 : vector<16x128xf32> to vector<16x128xbf16>
      %c0_26 = arith.constant 0 : index
      %c0_27 = arith.constant 0 : index
      %40 = vector.load %arg7[%c0_26, %c0_27] : memref<128x256xbf16, #tpu.memory_space<vmem>>, vector<128x256xbf16>
      %cst_28 = arith.constant dense<0.000000e+00> : vector<16x256xf32>
      %41 = tpu.matmul %39, %40, %cst_28 {dimension_numbers = #tpu.dot_dimension_numbers<[1], [0], [0], [1], [0, 0, 1, 1], [], []>} : vector<16x128xbf16>, vector<128x256xbf16>, vector<16x256xf32> -> vector<16x256xf32>
      %c0_29 = arith.constant 0 : index
      %c0_30 = arith.constant 0 : index
      %42 = vector.load %arg8[%c0_29, %c0_30] : memref<1x256xf32, #tpu.memory_space<vmem>>, vector<1x256xf32>
      %43 = vector.broadcast %42 : vector<1x256xf32> to vector<16x256xf32>
      %44 = arith.addf %41, %43 : vector<16x256xf32>
      %cst_31 = arith.constant 0.000000e+00 : f32
      %45 = vector.broadcast %cst_31 : f32 to vector<16x256xf32>
      %46 = arith.maximumf %44, %45 : vector<16x256xf32>
      %47 = arith.truncf %46 : vector<16x256xf32> to vector<16x256xbf16>
      %c0_32 = arith.constant 0 : index
      %c0_33 = arith.constant 0 : index
      %48 = vector.load %arg9[%c0_32, %c0_33] : memref<256x256xbf16, #tpu.memory_space<vmem>>, vector<256x256xbf16>
      %cst_34 = arith.constant dense<0.000000e+00> : vector<16x256xf32>
      %49 = tpu.matmul %47, %48, %cst_34 {dimension_numbers = #tpu.dot_dimension_numbers<[1], [0], [0], [1], [0, 0, 1, 1], [], []>} : vector<16x256xbf16>, vector<256x256xbf16>, vector<16x256xf32> -> vector<16x256xf32>
      %c0_35 = arith.constant 0 : index
      %c0_36 = arith.constant 0 : index
      %50 = vector.load %arg10[%c0_35, %c0_36] : memref<1x256xf32, #tpu.memory_space<vmem>>, vector<1x256xf32>
      %51 = vector.broadcast %50 : vector<1x256xf32> to vector<16x256xf32>
      %52 = arith.addf %49, %51 : vector<16x256xf32>
      %cst_37 = arith.constant 0.000000e+00 : f32
      %53 = vector.broadcast %cst_37 : f32 to vector<16x256xf32>
      %54 = arith.maximumf %52, %53 : vector<16x256xf32>
      %55 = arith.truncf %54 : vector<16x256xf32> to vector<16x256xbf16>
      %c0_38 = arith.constant 0 : index
      %c0_39 = arith.constant 0 : index
      %56 = vector.load %arg11[%c0_38, %c0_39] : memref<256x128xbf16, #tpu.memory_space<vmem>>, vector<256x128xbf16>
      %cst_40 = arith.constant dense<0.000000e+00> : vector<16x128xf32>
      %57 = tpu.matmul %55, %56, %cst_40 {dimension_numbers = #tpu.dot_dimension_numbers<[1], [0], [0], [1], [0, 0, 1, 1], [], []>} : vector<16x256xbf16>, vector<256x128xbf16>, vector<16x128xf32> -> vector<16x128xf32>
      %c0_41 = arith.constant 0 : index
      %c0_42 = arith.constant 0 : index
      %58 = vector.load %arg12[%c0_41, %c0_42] : memref<1x128xf32, #tpu.memory_space<vmem>>, vector<1x128xf32>
      %59 = vector.broadcast %58 : vector<1x128xf32> to vector<16x128xf32>
      %60 = arith.addf %57, %59 : vector<16x128xf32>
      %cst_43 = arith.constant 0.000000e+00 : f32
      %61 = vector.broadcast %cst_43 : f32 to vector<16x128xf32>
      %62 = arith.maximumf %60, %61 : vector<16x128xf32>
      %63 = arith.truncf %62 : vector<16x128xf32> to vector<16x128xbf16>
      %c0_44 = arith.constant 0 : index
      %c0_45 = arith.constant 0 : index
      %64 = vector.load %arg13[%c0_44, %c0_45] : memref<128x128xbf16, #tpu.memory_space<vmem>>, vector<128x128xbf16>
      %cst_46 = arith.constant dense<0.000000e+00> : vector<16x128xf32>
      %65 = tpu.matmul %63, %64, %cst_46 {dimension_numbers = #tpu.dot_dimension_numbers<[1], [0], [0], [1], [0, 0, 1, 1], [], []>} : vector<16x128xbf16>, vector<128x128xbf16>, vector<16x128xf32> -> vector<16x128xf32>
      %c0_47 = arith.constant 0 : index
      %c0_48 = arith.constant 0 : index
      %66 = vector.load %arg14[%c0_47, %c0_48] : memref<1x128xf32, #tpu.memory_space<vmem>>, vector<1x128xf32>
      %67 = vector.broadcast %66 : vector<1x128xf32> to vector<16x128xf32>
      %68 = arith.addf %65, %67 : vector<16x128xf32>
      %c0_49 = arith.constant 0 : index
      %c0_50 = arith.constant 0 : index
      %69 = vector.load %arg15[%c0_49, %c0_50] : memref<16x128xf32, #tpu.memory_space<vmem>>, vector<16x128xf32>
      tpu.vector_store %arg15[%c0_49, %c0_50], %68 {strides = array<i32>} : memref<16x128xf32, #tpu.memory_space<vmem>>, vector<16x128xf32>,
    } else {
    }
    return
  }
  func.func @transform_0(%arg0: i32) -> (i32, i32) {
    %c0_i32 = arith.constant 0 : i32
    %c0_i32_0 = arith.constant 0 : i32
    return %arg0, %c0_i32 : i32, i32
  }
  func.func @transform_1(%arg0: i32) -> (i32, i32) {
    %c0_i32 = arith.constant 0 : i32
    %c0_i32_0 = arith.constant 0 : i32
    return %arg0, %c0_i32 : i32, i32
  }
  func.func @transform_2(%arg0: i32) -> (i32, i32) {
    %c0_i32 = arith.constant 0 : i32
    %c0_i32_0 = arith.constant 0 : i32
    return %c0_i32, %arg0 : i32, i32
  }
  func.func @transform_3(%arg0: i32) -> (i32, i32) {
    %c0_i32 = arith.constant 0 : i32
    %c0_i32_0 = arith.constant 0 : i32
    return %c0_i32, %arg0 : i32, i32
  }
  func.func @transform_4(%arg0: i32) -> (i32, i32) {
    %c0_i32 = arith.constant 0 : i32
    %c0_i32_0 = arith.constant 0 : i32
    %c0_i32_1 = arith.constant 0 : i32
    return %c0_i32, %c0_i32_0 : i32, i32
  }
  func.func @transform_5(%arg0: i32) -> (i32, i32) {
    %c0_i32 = arith.constant 0 : i32
    %c0_i32_0 = arith.constant 0 : i32
    %c0_i32_1 = arith.constant 0 : i32
    return %c0_i32, %c0_i32_0 : i32, i32
  }
  func.func @transform_6(%arg0: i32) -> (i32, i32) {
    %c0_i32 = arith.constant 0 : i32
    %c0_i32_0 = arith.constant 0 : i32
    %c0_i32_1 = arith.constant 0 : i32
    return %c0_i32, %c0_i32_0 : i32, i32
  }
  func.func @transform_7(%arg0: i32) -> (i32, i32) {
    %c0_i32 = arith.constant 0 : i32
    %c0_i32_0 = arith.constant 0 : i32
    %c0_i32_1 = arith.constant 0 : i32
    return %c0_i32, %c0_i32_0 : i32, i32
  }
  func.func @transform_8(%arg0: i32) -> (i32, i32) {
    %c0_i32 = arith.constant 0 : i32
    %c0_i32_0 = arith.constant 0 : i32
    %c0_i32_1 = arith.constant 0 : i32
    return %c0_i32, %c0_i32_0 : i32, i32
  }
  func.func @transform_9(%arg0: i32) -> (i32, i32) {
    %c0_i32 = arith.constant 0 : i32
    %c0_i32_0 = arith.constant 0 : i32
    %c0_i32_1 = arith.constant 0 : i32
    return %c0_i32, %c0_i32_0 : i32, i32
  }
  func.func @transform_10(%arg0: i32) -> (i32, i32) {
    %c0_i32 = arith.constant 0 : i32
    %c0_i32_0 = arith.constant 0 : i32
    %c0_i32_1 = arith.constant 0 : i32
    return %c0_i32, %c0_i32_0 : i32, i32
  }
  func.func @transform_11(%arg0: i32) -> (i32, i32) {
    %c0_i32 = arith.constant 0 : i32
    %c0_i32_0 = arith.constant 0 : i32
    %c0_i32_1 = arith.constant 0 : i32
    return %c0_i32, %c0_i32_0 : i32, i32
  }
  func.func @transform_12(%arg0: i32) -> (i32, i32) {
    %c0_i32 = arith.constant 0 : i32
    %c0_i32_0 = arith.constant 0 : i32
    %c0_i32_1 = arith.constant 0 : i32
    return %c0_i32, %c0_i32_0 : i32, i32
  }
  func.func @transform_13(%arg0: i32) -> (i32, i32) {
    %c0_i32 = arith.constant 0 : i32
    %c0_i32_0 = arith.constant 0 : i32
    %c0_i32_1 = arith.constant 0 : i32
    return %c0_i32, %c0_i32_0 : i32, i32
  }
  func.func @transform_14(%arg0: i32) -> (i32, i32) {
    %c0_i32 = arith.constant 0 : i32
    %c0_i32_0 = arith.constant 0 : i32
    %c0_i32_1 = arith.constant 0 : i32
    return %c0_i32, %c0_i32_0 : i32, i32
  }
}

</mosaic_0001>

<llo_original>
// kernel: tpu_custom_call.1
$region0: #{tpu_custom_call.1}
  #allocation0 [shape = 'u32[]', space=smem, size = 0x4, offset = 0x4, fixed_abs, tag = 'smem constant byte address 0x4 - core index']
  #allocation1 [shape = 'u32[144,128]{1,0:T(1,128)}', space=vmem, size = 0x12000, scoped, tag = 'internal scratch']
  #allocation2 [shape = 'f32[16,256]{1,0:T(8,128)}', space=vmem, size = 0x4000, scoped, tag = 'scratch operand']
  %s0 = inlined_call_operand.hbm [shape: bf16[16,128], index: 0, kind: input, shape index: {}]
  %s1 = inlined_call_operand.hbm [shape: bf16[16,128], index: 1, kind: input, shape index: {}]
  %s2 = inlined_call_operand.vmem [shape: s32[1,16], index: 2, kind: input, shape index: {}]
  %s3 = inlined_call_operand.hbm [shape: s32[1,16], index: 3, kind: input, shape index: {}]
  %s4 = inlined_call_operand.hbm [shape: bf16[256,128], index: 4, kind: input, shape index: {}]
  %s5 = inlined_call_operand.vmem [shape: f32[1,128], index: 5, kind: input, shape index: {}]
  %s6 = inlined_call_operand.hbm [shape: bf16[128,256], index: 6, kind: input, shape index: {}]
  %s7 = inlined_call_operand.vmem [shape: f32[1,256], index: 7, kind: input, shape index: {}]
  %s8 = inlined_call_operand.hbm [shape: bf16[256,256], index: 8, kind: input, shape index: {}]
  %s9 = inlined_call_operand.vmem [shape: f32[1,256], index: 9, kind: input, shape index: {}]
  %s10 = inlined_call_operand.hbm [shape: bf16[256,128], index: 10, kind: input, shape index: {}]
  %s11 = inlined_call_operand.vmem [shape: f32[1,128], index: 11, kind: input, shape index: {}]
  %s12 = inlined_call_operand.hbm [shape: bf16[128,128], index: 12, kind: input, shape index: {}]
  %s13 = inlined_call_operand.vmem [shape: f32[1,128], index: 13, kind: input, shape index: {}]
  %s14 = inlined_call_operand.hbm [shape: f32[16,128], index: 14, kind: output, shape index: {}]
  %s15 = sld [smem:[#allocation0]]
  $region106: #{tpu_custom_call.1} parent=0
    _
  %s17 = ssub.s32 1, %s15
  %s18 = scalar_select 0, %s17, %s15
  $region1: #{tpu_custom_call.1} parent=0
    #allocation3 [shape = 'u8[4096]{0}', space=vmem, size = 0x1000, scoped, tag = 'input window, operand 0, single buffered']
    #allocation4 [shape = 's32[1]{0}', space=sflag, size = 0x4, scoped, tag = 'scoped memory for tpu_custom_call.1']
    #allocation5 [shape = 's32[1]{0}', space=sflag, size = 0x4, scoped, tag = 'scoped memory for tpu_custom_call.1']
    #allocation6 [shape = 'u8[4096]{0}', space=vmem, size = 0x1000, scoped, tag = 'input window, operand 1, single buffered']
    #allocation7 [shape = 's32[1]{0}', space=sflag, size = 0x4, scoped, tag = 'scoped memory for tpu_custom_call.1']
    #allocation8 [shape = 'u8[512]{0}', space=vmem, size = 0x400, scoped, tag = 'input window, operand 3, single buffered']
    #allocation9 [shape = 'u8[65536]{0}', space=vmem, size = 0x10000, scoped, tag = 'input window, operand 4, single buffered']
    #allocation10 [shape = 's32[1]{0}', space=sflag, size = 0x4, scoped, tag = 'scoped memory for tpu_custom_call.1']
    #allocation11 [shape = 'u8[65536]{0}', space=vmem, size = 0x10000, scoped, tag = 'input window, operand 6, single buffered']
    #allocation12 [shape = 'u8[131072]{0}', space=vmem, size = 0x20000, scoped, tag = 'input window, operand 8, single buffered']
    #allocation13 [shape = 's32[1]{0}', space=sflag, size = 0x4, scoped, tag = 'scoped memory for tpu_custom_call.1']
    #allocation14 [shape = 'u8[65536]{0}', space=vmem, size = 0x10000, scoped, tag = 'input window, operand 10, single buffered']
    #allocation15 [shape = 'u8[32768]{0}', space=vmem, size = 0x8000, scoped, tag = 'input window, operand 12, single buffered']
    #allocation16 [shape = 's32[1]{0}', space=sflag, size = 0x4, scoped, tag = 'scoped memory for tpu_custom_call.1']
    #allocation17 [shape = 'u8[8192]{0}', space=vmem, size = 0x2000, scoped, tag = 'output window, operand 0, single buffered']
    %19 = vsyncpa [#allocation4], 0
    %20 = vsyncpa [#allocation7], 0
    %21 = vsyncpa [#allocation10], 0
    %22 = vsyncpa [#allocation13], 0
    %23 = vsyncpa [#allocation16], 0
    %24 = vsyncpa [#allocation5], 0
    // Predicated region
    $region2: #{tpu_custom_call.1} parent=1 // pred_check
      _
    $region3: #{tpu_custom_call.1} parent=1 // pred_check_branch
      %26 = sbr.rel (0) target = $region5
    $region4: #{tpu_custom_call.1} parent=1 // pred_region
      %s28 = ssub.s32 128, 128
      %29 = vsyncadd [#allocation4], %s28
      %s30 = sshll.u32 [#allocation3], 4
      %s31 = int_to_ptr.vmem [resolvable:$true] %s30
      %36 = dma.hbm_to_vmem [thread:$0]  %s0, 128, %s31, [#allocation4], 64, 64, 4
    $region5: #{tpu_custom_call.1} parent=1 // pred_fallthru
      _
    // Predicated region
    $region6: #{tpu_custom_call.1} parent=1 // pred_check
      _
    $region7: #{tpu_custom_call.1} parent=1 // pred_check_branch
      %38 = sbr.rel (0) target = $region9
    $region8: #{tpu_custom_call.1} parent=1 // pred_region
      %s40 = ssub.s32 128, 128
      %41 = vsyncadd [#allocation7], %s40
      %s42 = sshll.u32 [#allocation6], 4
      %s43 = int_to_ptr.vmem [resolvable:$true] %s42
      %48 = dma.hbm_to_vmem [thread:$0]  %s1, 128, %s43, [#allocation7], 64, 64, 4
    $region9: #{tpu_custom_call.1} parent=1 // pred_fallthru
      _
    // Predicated region
    $region10: #{tpu_custom_call.1} parent=1 // pred_check
      _
    $region11: #{tpu_custom_call.1} parent=1 // pred_check_branch
      %50 = sbr.rel (0) target = $region13
    $region12: #{tpu_custom_call.1} parent=1 // pred_region
      _
    $region13: #{tpu_custom_call.1} parent=1 // pred_fallthru
      _
    // Predicated region
    $region14: #{tpu_custom_call.1} parent=1 // pred_check
      _
    $region15: #{tpu_custom_call.1} parent=1 // pred_check_branch
      %52 = sbr.rel (0) target = $region17
    $region16: #{tpu_custom_call.1} parent=1 // pred_region
      %s54 = ssub.s32 16, 16
      %55 = vsyncadd [#allocation7], %s54
      %s57 = sshll.u32 [#allocation8], 4
      %s58 = int_to_ptr.vmem [resolvable:$true] %s57
      %60 = dma.hbm_to_vmem [thread:$0]  %s3, 16, %s58, [#allocation7]
    $region17: #{tpu_custom_call.1} parent=1 // pred_fallthru
      _
    // Predicated region
    $region18: #{tpu_custom_call.1} parent=1 // pred_check
      _
    $region19: #{tpu_custom_call.1} parent=1 // pred_check_branch
      %62 = sbr.rel (0) target = $region21
    $region20: #{tpu_custom_call.1} parent=1 // pred_region
      %s64 = ssub.s32 2048, 2048
      %65 = vsyncadd [#allocation10], %s64
      %s66 = sshll.u32 [#allocation9], 4
      %s67 = int_to_ptr.vmem [resolvable:$true] %s66
      %72 = dma.hbm_to_vmem [thread:$0]  %s4, 2048, %s67, [#allocation10], 64, 64, 4
    $region21: #{tpu_custom_call.1} parent=1 // pred_fallthru
      _
    // Predicated region
    $region22: #{tpu_custom_call.1} parent=1 // pred_check
      _
    $region23: #{tpu_custom_call.1} parent=1 // pred_check_branch
      %74 = sbr.rel (0) target = $region25
    $region24: #{tpu_custom_call.1} parent=1 // pred_region
      _
    $region25: #{tpu_custom_call.1} parent=1 // pred_fallthru
      _
    // Predicated region
    $region26: #{tpu_custom_call.1} parent=1 // pred_check
      _
    $region27: #{tpu_custom_call.1} parent=1 // pred_check_branch
      %76 = sbr.rel (0) target = $region29
    $region28: #{tpu_custom_call.1} parent=1 // pred_region
      %s78 = ssub.s32 2048, 2048
      %79 = vsyncadd [#allocation10], %s78
      %s80 = sshll.u32 [#allocation11], 4
      %s81 = int_to_ptr.vmem [resolvable:$true] %s80
      %86 = dma.hbm_to_vmem [thread:$0]  %s6, 2048, %s81, [#allocation10], 128, 128, 8
    $region29: #{tpu_custom_call.1} parent=1 // pred_fallthru
      _
    // Predicated region
    $region30: #{tpu_custom_call.1} parent=1 // pred_check
      _
    $region31: #{tpu_custom_call.1} parent=1 // pred_check_branch
      %88 = sbr.rel (0) target = $region33
    $region32: #{tpu_custom_call.1} parent=1 // pred_region
      _
    $region33: #{tpu_custom_call.1} parent=1 // pred_fallthru
      _
    // Predicated region
    $region34: #{tpu_custom_call.1} parent=1 // pred_check
      _
    $region35: #{tpu_custom_call.1} parent=1 // pred_check_branch
      %90 = sbr.rel (0) target = $region37
    $region36: #{tpu_custom_call.1} parent=1 // pred_region
      %s92 = ssub.s32 4096, 4096
      %93 = vsyncadd [#allocation13], %s92
      %s94 = sshll.u32 [#allocation12], 4
      %s95 = int_to_ptr.vmem [resolvable:$true] %s94
      %100 = dma.hbm_to_vmem [thread:$0]  %s8, 4096, %s95, [#allocation13], 128, 128, 8
    $region37: #{tpu_custom_call.1} parent=1 // pred_fallthru
      _
    // Predicated region
    $region38: #{tpu_custom_call.1} parent=1 // pred_check
      _
    $region39: #{tpu_custom_call.1} parent=1 // pred_check_branch
      %102 = sbr.rel (0) target = $region41
    $region40: #{tpu_custom_call.1} parent=1 // pred_region
      _
    $region41: #{tpu_custom_call.1} parent=1 // pred_fallthru
      _
    // Predicated region
    $region42: #{tpu_custom_call.1} parent=1 // pred_check
      _
    $region43: #{tpu_custom_call.1} parent=1 // pred_check_branch
      %104 = sbr.rel (0) target = $region45
    $region44: #{tpu_custom_call.1} parent=1 // pred_region
      %s106 = ssub.s32 2048, 2048
      %107 = vsyncadd [#allocation13], %s106
      %s108 = sshll.u32 [#allocation14], 4
      %s109 = int_to_ptr.vmem [resolvable:$true] %s108
      %114 = dma.hbm_to_vmem [thread:$0]  %s10, 2048, %s109, [#allocation13], 64, 64, 4
    $region45: #{tpu_custom_call.1} parent=1 // pred_fallthru
      _
    // Predicated region
    $region46: #{tpu_custom_call.1} parent=1 // pred_check
      _
    $region47: #{tpu_custom_call.1} parent=1 // pred_check_branch
      %116 = sbr.rel (0) target = $region49
    $region48: #{tpu_custom_call.1} parent=1 // pred_region
      _
    $region49: #{tpu_custom_call.1} parent=1 // pred_fallthru
      _
    // Predicated region
    $region50: #{tpu_custom_call.1} parent=1 // pred_check
      _
    $region51: #{tpu_custom_call.1} parent=1 // pred_check_branch
      %118 = sbr.rel (0) target = $region53
    $region52: #{tpu_custom_call.1} parent=1 // pred_region
      %s120 = ssub.s32 1024, 1024
      %121 = vsyncadd [#allocation16], %s120
      %s122 = sshll.u32 [#allocation15], 4
      %s123 = int_to_ptr.vmem [resolvable:$true] %s122
      %128 = dma.hbm_to_vmem [thread:$0]  %s12, 1024, %s123, [#allocation16], 64, 64, 4
    $region53: #{tpu_custom_call.1} parent=1 // pred_fallthru
      _
    // Predicated region
    $region54: #{tpu_custom_call.1} parent=1 // pred_check
      _
    $region55: #{tpu_custom_call.1} parent=1 // pred_check_branch
      %130 = sbr.rel (0) target = $region57
    $region56: #{tpu_custom_call.1} parent=1 // pred_region
      _
    $region57: #{tpu_custom_call.1} parent=1 // pred_fallthru
      _
    // Predicated region
    $region58: #{tpu_custom_call.1} parent=1 // pred_check
      _
    $region59: #{tpu_custom_call.1} parent=1 // pred_check_branch
      %132 = sbr.rel (0) target = $region61
    $region60: #{tpu_custom_call.1} parent=1 // pred_region
      %133 = dma.done [#allocation4], 128
    $region61: #{tpu_custom_call.1} parent=1 // pred_fallthru
      _
    // Predicated region
    $region62: #{tpu_custom_call.1} parent=1 // pred_check
      _
    $region63: #{tpu_custom_call.1} parent=1 // pred_check_branch
      %135 = sbr.rel (0) target = $region65
    $region64: #{tpu_custom_call.1} parent=1 // pred_region
      %136 = dma.done [#allocation7], 128
    $region65: #{tpu_custom_call.1} parent=1 // pred_fallthru
      _
    // Predicated region
    $region66: #{tpu_custom_call.1} parent=1 // pred_check
      _
    $region67: #{tpu_custom_call.1} parent=1 // pred_check_branch
      %138 = sbr.rel (0) target = $region69
    $region68: #{tpu_custom_call.1} parent=1 // pred_region
      %139 = dma.done [#allocation7], 16
    $region69: #{tpu_custom_call.1} parent=1 // pred_fallthru
      _
    // Predicated region
    $region70: #{tpu_custom_call.1} parent=1 // pred_check
      _
    $region71: #{tpu_custom_call.1} parent=1 // pred_check_branch
      %141 = sbr.rel (0) target = $region73
    $region72: #{tpu_custom_call.1} parent=1 // pred_region
      %142 = dma.done [#allocation10], 2048
    $region73: #{tpu_custom_call.1} parent=1 // pred_fallthru
      _
    // Predicated region
    $region74: #{tpu_custom_call.1} parent=1 // pred_check
      _
    $region75: #{tpu_custom_call.1} parent=1 // pred_check_branch
      %144 = sbr.rel (0) target = $region77
    $region76: #{tpu_custom_call.1} parent=1 // pred_region
      %145 = dma.done [#allocation10], 2048
    $region77: #{tpu_custom_call.1} parent=1 // pred_fallthru
      _
    // Predicated region
    $region78: #{tpu_custom_call.1} parent=1 // pred_check
      _
    $region79: #{tpu_custom_call.1} parent=1 // pred_check_branch
      %147 = sbr.rel (0) target = $region81
    $region80: #{tpu_custom_call.1} parent=1 // pred_region
      %148 = dma.done [#allocation13], 4096
    $region81: #{tpu_custom_call.1} parent=1 // pred_fallthru
      _
    // Predicated region
    $region82: #{tpu_custom_call.1} parent=1 // pred_check
      _
    $region83: #{tpu_custom_call.1} parent=1 // pred_check_branch
      %150 = sbr.rel (0) target = $region85
    $region84: #{tpu_custom_call.1} parent=1 // pred_region
      %151 = dma.done [#allocation13], 2048
    $region85: #{tpu_custom_call.1} parent=1 // pred_fallthru
      _
    // Predicated region
    $region86: #{tpu_custom_call.1} parent=1 // pred_check
      _
    $region87: #{tpu_custom_call.1} parent=1 // pred_check_branch
      %153 = sbr.rel (0) target = $region89
    $region88: #{tpu_custom_call.1} parent=1 // pred_region
      %154 = dma.done [#allocation16], 1024
    $region89: #{tpu_custom_call.1} parent=1 // pred_fallthru
      _
    %p156 = scmp.eq.s32.totalorder 0, 0
    // Predicated region
    $region90: #{tpu_custom_call.1} parent=1 // pred_check
      %p157 = pneg %p156
    $region91: #{tpu_custom_call.1} parent=1 // pred_check_branch
      %159 = sbr.rel (%p157) target = $region93
    $region92: #{tpu_custom_call.1} parent=1 // pred_region
      %160 = vst [vmem:[#allocation2] sm:$0xff] 0.0
      %161 = vst [vmem:[#allocation2 + $0x8] sm:$0xff] 0.0
      %162 = vst [vmem:[#allocation2 + $0x10] sm:$0xff] 0.0
      %163 = vst [vmem:[#allocation2 + $0x18] sm:$0xff] 0.0
    $region93: #{tpu_custom_call.1} parent=1 // pred_fallthru
      _
    %v164 = vld [vmem:[%s2] sm:$0x1]
    %v165 = vlaneseq
    %v166 = vshrl.u32 %v165, 7
    %v167 = vadd.s32 %v166, 8
    %v168 = vlaneseq
    %v169 = vshrl.u32 %v168, 7
    %v170 = vsub.s32 0, %v169
    %v171 = vrot.slane %v164, %v170
    %vm172 = vcmp.eq.s32.totalorder %v166, %v171
    %vm173 = vcmp.eq.s32.totalorder %v167, %v171
    %v174 = vsel %vm172, 1, 0
    %v175 = vsel %vm173, 1, 0
    %v176 = vcvt.s32.f32 %v174
    %v177 = vcvt.s32.f32 %v175
    %v178 = vpack.c.bf16 %v177, %v176
    %v179 = vld [vmem:[#allocation3] sm:$0xf]
    %v180 = vld [vmem:[#allocation3 + $0x4] sm:$0xf]
    %v181 = vld [vmem:[#allocation2] sm:$0xff]
    %v182 = vld [vmem:[#allocation2 + $0x10] sm:$0xff]
    %v185 = vunpack.c.l.b16 %v179
    %v186 = vunpack.c.l.b16 %v180
    %v187 = vpack.c.b16 %v186, %v185
    %vm189 = vcmask 130048
    %v191 = vsel %vm189, %v178, 0
    %193 = vmatprep.subr.bf16.mxu0 0
    %194 = vmatpush1.bf16.msra.mxu0 0
    %195 = vmatprep.subr.bf16.mxu0 0
    %196 = vmatpush1.bf16.msra.mxu0 0
    %197 = vmatprep.subr.bf16.mxu0 0
    %198 = vmatpush1.bf16.msra.mxu0 0
    %199 = vmatprep.subr.bf16.mxu0 0
    %200 = vmatpush1.bf16.msra.mxu0 0
    %201 = vmatprep.subr.bf16.mxu0 0
    %202 = vmatpush1.bf16.msra.mxu0 0
    %203 = vmatprep.subr.bf16.mxu0 0
    %204 = vmatpush1.bf16.msra.mxu0 0
    %205 = vmatprep.subr.bf16.mxu0 0
    %206 = vmatpush1.bf16.msra.mxu0 0
    %207 = vmatprep.subr.bf16.mxu0 0
    %208 = vmatpush1.bf16.msra.mxu0 %v187
    %209 = vmatprep.subr.bf16.mxu0 0
    %210 = vmatpush2.bf16.msra.mxu0 0
    %211 = vmatprep.subr.bf16.mxu0 0
    %212 = vmatpush2.bf16.msra.mxu0 0
    %213 = vmatprep.subr.bf16.mxu0 0
    %214 = vmatpush2.bf16.msra.mxu0 0
    %215 = vmatprep.subr.bf16.mxu0 0
    %216 = vmatpush2.bf16.msra.mxu0 0
    %217 = vmatprep.subr.bf16.mxu0 0
    %218 = vmatpush2.bf16.msra.mxu0 0
    %219 = vmatprep.subr.bf16.mxu0 0
    %220 = vmatpush2.bf16.msra.mxu0 0
    %221 = vmatprep.subr.bf16.mxu0 0
    %222 = vmatpush2.bf16.msra.mxu0 0
    %223 = vmatprep.subr.bf16.mxu0 0
    %224 = vmatpush2.bf16.msra.mxu0 0
    %225 = vmatprep.mubr.bf16.mxu0 0
    %226 = vmatmul.mubr.bf16.gmra.mxu0 %v191
    %v227 = vpop.f32.mrf.mxu0
    %v228 = vadd.f32 0.0, %v227
    %v229 = vpop.f32.mrf.mxu0
    %v230 = vpop.f32.mrf.mxu0
    %v231 = vadd.f32 0.0, %v230
    %v232 = vpop.f32.mrf.mxu0
    %233 = vdwg.mxu0
    %v234 = vadd.f32 %v181, %v228
    %v235 = vadd.f32 %v182, %v231
    %236 = vst [vmem:[#allocation2] sm:$0xff] %v234
    %237 = vst [vmem:[#allocation2 + $0x10] sm:$0xff] %v235
    %v238 = vld [vmem:[#allocation8] sm:$0x1]
    %v239 = vlaneseq
    %v240 = vshrl.u32 %v239, 7
    %v241 = vsub.s32 0, %v240
    %v242 = vrot.slane %v238, %v241
    %vm243 = vcmp.eq.s32.totalorder %v166, %v242
    %vm244 = vcmp.eq.s32.totalorder %v167, %v242
    %v245 = vsel %vm243, 1, 0
    %v246 = vsel %vm244, 1, 0
    %v247 = vcvt.s32.f32 %v245
    %v248 = vcvt.s32.f32 %v246
    %v249 = vpack.c.bf16 %v248, %v247
    %v250 = vld [vmem:[#allocation6] sm:$0xf]
    %v251 = vld [vmem:[#allocation6 + $0x4] sm:$0xf]
    %v252 = vld [vmem:[#allocation2 + $0x8] sm:$0xff]
    %v253 = vld [vmem:[#allocation2 + $0x18] sm:$0xff]
    %v256 = vunpack.c.l.b16 %v250
    %v257 = vunpack.c.l.b16 %v251
    %v258 = vpack.c.b16 %v257, %v256
    %v261 = vsel %vm189, %v249, 0
    %263 = vmatprep.subr.bf16.mxu0 0
    %264 = vmatpush1.bf16.msra.mxu0 0
    %265 = vmatprep.subr.bf16.mxu0 0
    %266 = vmatpush1.bf16.msra.mxu0 0
    %267 = vmatprep.subr.bf16.mxu0 0
    %268 = vmatpush1.bf16.msra.mxu0 0
    %269 = vmatprep.subr.bf16.mxu0 0
    %270 = vmatpush1.bf16.msra.mxu0 0
    %271 = vmatprep.subr.bf16.mxu0 0
    %272 = vmatpush1.bf16.msra.mxu0 0
    %273 = vmatprep.subr.bf16.mxu0 0
    %274 = vmatpush1.bf16.msra.mxu0 0
    %275 = vmatprep.subr.bf16.mxu0 0
    %276 = vmatpush1.bf16.msra.mxu0 0
    %277 = vmatprep.subr.bf16.mxu0 0
    %278 = vmatpush1.bf16.msra.mxu0 %v258
    %279 = vmatprep.subr.bf16.mxu0 0
    %280 = vmatpush2.bf16.msra.mxu0 0
    %281 = vmatprep.subr.bf16.mxu0 0
    %282 = vmatpush2.bf16.msra.mxu0 0
    %283 = vmatprep.subr.bf16.mxu0 0
    %284 = vmatpush2.bf16.msra.mxu0 0
    %285 = vmatprep.subr.bf16.mxu0 0
    %286 = vmatpush2.bf16.msra.mxu0 0
    %287 = vmatprep.subr.bf16.mxu0 0
    %288 = vmatpush2.bf16.msra.mxu0 0
    %289 = vmatprep.subr.bf16.mxu0 0
    %290 = vmatpush2.bf16.msra.mxu0 0
    %291 = vmatprep.subr.bf16.mxu0 0
    %292 = vmatpush2.bf16.msra.mxu0 0
    %293 = vmatprep.subr.bf16.mxu0 0
    %294 = vmatpush2.bf16.msra.mxu0 0
    %295 = vmatprep.mubr.bf16.mxu0 0
    %296 = vmatmul.mubr.bf16.gmra.mxu0 %v261
    %v297 = vpop.f32.mrf.mxu0
    %v298 = vadd.f32 0.0, %v297
    %v299 = vpop.f32.mrf.mxu0
    %v300 = vpop.f32.mrf.mxu0
    %v301 = vadd.f32 0.0, %v300
    %v302 = vpop.f32.mrf.mxu0
    %303 = vdwg.mxu0
    %v304 = vadd.f32 %v252, %v298
    %v305 = vadd.f32 %v253, %v301
    %306 = vst [vmem:[#allocation2 + $0x8] sm:$0xff] %v304
    %307 = vst [vmem:[#allocation2 + $0x18] sm:$0xff] %v305
    // Predicated region
    $region94: #{tpu_custom_call.1} parent=1 // pred_check
      %p308 = pneg %p156
    $region95: #{tpu_custom_call.1} parent=1 // pred_check_branch
      %310 = sbr.rel (%p308) target = $region97
    $region96: #{tpu_custom_call.1} parent=1 // pred_region
      %v311 = vld [vmem:[#allocation2] sm:$0xff]
      %v312 = vld [vmem:[#allocation2 + $0x8] sm:$0xff]
      %v313 = vld [vmem:[#allocation2 + $0x10] sm:$0xff]
      %v314 = vld [vmem:[#allocation2 + $0x18] sm:$0xff]
      %v315 = vpack.c.bf16 %v313, %v311
      %v316 = vpack.c.bf16 %v314, %v312
      %v317 = vld [vmem:[#allocation9] sm:$0xf]
      %v318 = vld [vmem:[#allocation9 + $0x4] sm:$0xf]
      %v319 = vld [vmem:[#allocation9 + $0x8] sm:$0xf]
      %v320 = vld [vmem:[#allocation9 + $0xc] sm:$0xf]
      %v321 = vld [vmem:[#allocation9 + $0x10] sm:$0xf]
      %v322 = vld [vmem:[#allocation9 + $0x14] sm:$0xf]
      %v323 = vld [vmem:[#allocation9 + $0x18] sm:$0xf]
      %v324 = vld [vmem:[#allocation9 + $0x1c] sm:$0xf]
      %v325 = vld [vmem:[#allocation9 + $0x20] sm:$0xf]
      %v326 = vld [vmem:[#allocation9 + $0x24] sm:$0xf]
      %v327 = vld [vmem:[#allocation9 + $0x28] sm:$0xf]
      %v328 = vld [vmem:[#allocation9 + $0x2c] sm:$0xf]
      %v329 = vld [vmem:[#allocation9 + $0x30] sm:$0xf]
      %v330 = vld [vmem:[#allocation9 + $0x34] sm:$0xf]
      %v331 = vld [vmem:[#allocation9 + $0x38] sm:$0xf]
      %v332 = vld [vmem:[#allocation9 + $0x3c] sm:$0xf]
      %v333 = vld [vmem:[#allocation9 + $0x40] sm:$0xf]
      %v334 = vld [vmem:[#allocation9 + $0x44] sm:$0xf]
      %v335 = vld [vmem:[#allocation9 + $0x48] sm:$0xf]
      %v336 = vld [vmem:[#allocation9 + $0x4c] sm:$0xf]
      %v337 = vld [vmem:[#allocation9 + $0x50] sm:$0xf]
      %v338 = vld [vmem:[#allocation9 + $0x54] sm:$0xf]
      %v339 = vld [vmem:[#allocation9 + $0x58] sm:$0xf]
      %v340 = vld [vmem:[#allocation9 + $0x5c] sm:$0xf]
      %v341 = vld [vmem:[#allocation9 + $0x60] sm:$0xf]
      %v342 = vld [vmem:[#allocation9 + $0x64] sm:$0xf]
      %v343 = vld [vmem:[#allocation9 + $0x68] sm:$0xf]
      %v344 = vld [vmem:[#allocation9 + $0x6c] sm:$0xf]
      %v345 = vld [vmem:[#allocation9 + $0x70] sm:$0xf]
      %v346 = vld [vmem:[#allocation9 + $0x74] sm:$0xf]
      %v347 = vld [vmem:[#allocation9 + $0x78] sm:$0xf]
      %v348 = vld [vmem:[#allocation9 + $0x7c] sm:$0xf]
      %v349 = vld [vmem:[%s5] sm:$0x1]
      %v351 = vlaneseq
      %v352 = vshrl.u32 %v351, 7
      %v353 = vsub.s32 0, %v352
      %v354 = vrot.slane %v349, %v353
      %v388 = vunpack.c.l.b16 %v317
      %v389 = vunpack.c.l.b16 %v318
      %v390 = vunpack.c.l.b16 %v319
      %v391 = vunpack.c.l.b16 %v320
      %v392 = vunpack.c.l.b16 %v321
      %v393 = vunpack.c.l.b16 %v322
      %v394 = vunpack.c.l.b16 %v323
      %v395 = vunpack.c.l.b16 %v324
      %v396 = vunpack.c.l.b16 %v325
      %v397 = vunpack.c.l.b16 %v326
      %v398 = vunpack.c.l.b16 %v327
      %v399 = vunpack.c.l.b16 %v328
      %v400 = vunpack.c.l.b16 %v329
      %v401 = vunpack.c.l.b16 %v330
      %v402 = vunpack.c.l.b16 %v331
      %v403 = vunpack.c.l.b16 %v332
      %v404 = vunpack.c.l.b16 %v333
      %v405 = vunpack.c.l.b16 %v334
      %v406 = vunpack.c.l.b16 %v335
      %v407 = vunpack.c.l.b16 %v336
      %v408 = vunpack.c.l.b16 %v337
      %v409 = vunpack.c.l.b16 %v338
      %v410 = vunpack.c.l.b16 %v339
      %v411 = vunpack.c.l.b16 %v340
      %v412 = vunpack.c.l.b16 %v341
      %v413 = vunpack.c.l.b16 %v342
      %v414 = vunpack.c.l.b16 %v343
      %v415 = vunpack.c.l.b16 %v344
      %v416 = vunpack.c.l.b16 %v345
      %v417 = vunpack.c.l.b16 %v346
      %v418 = vunpack.c.l.b16 %v347
      %v419 = vunpack.c.l.b16 %v348
      %v420 = vpack.c.b16 %v389, %v388
      %v421 = vpack.c.b16 %v391, %v390
      %v422 = vpack.c.b16 %v393, %v392
      %v423 = vpack.c.b16 %v395, %v394
      %v424 = vpack.c.b16 %v397, %v396
      %v425 = vpack.c.b16 %v399, %v398
      %v426 = vpack.c.b16 %v401, %v400
      %v427 = vpack.c.b16 %v403, %v402
      %v428 = vpack.c.b16 %v405, %v404
      %v429 = vpack.c.b16 %v407, %v406
      %v430 = vpack.c.b16 %v409, %v408
      %v431 = vpack.c.b16 %v411, %v410
      %v432 = vpack.c.b16 %v413, %v412
      %v433 = vpack.c.b16 %v415, %v414
      %v434 = vpack.c.b16 %v417, %v416
      %v435 = vpack.c.b16 %v419, %v418
      %452 = vmatprep.subr.bf16.mxu0 0
      %453 = vmatpush1.bf16.msra.mxu0 %v427
      %454 = vmatprep.subr.bf16.mxu0 0
      %455 = vmatpush1.bf16.msra.mxu0 %v426
      %456 = vmatprep.subr.bf16.mxu0 0
      %457 = vmatpush1.bf16.msra.mxu0 %v425
      %458 = vmatprep.subr.bf16.mxu0 0
      %459 = vmatpush1.bf16.msra.mxu0 %v424
      %460 = vmatprep.subr.bf16.mxu0 0
      %461 = vmatpush1.bf16.msra.mxu0 %v423
      %462 = vmatprep.subr.bf16.mxu0 0
      %463 = vmatpush1.bf16.msra.mxu0 %v422
      %464 = vmatprep.subr.bf16.mxu0 0
      %465 = vmatpush1.bf16.msra.mxu0 %v421
      %466 = vmatprep.subr.bf16.mxu0 0
      %467 = vmatpush1.bf16.msra.mxu0 %v420
      %468 = vmatprep.subr.bf16.mxu0 0
      %469 = vmatpush2.bf16.msra.mxu0 %v435
      %470 = vmatprep.subr.bf16.mxu0 0
      %471 = vmatpush2.bf16.msra.mxu0 %v434
      %472 = vmatprep.subr.bf16.mxu0 0
      %473 = vmatpush2.bf16.msra.mxu0 %v433
      %474 = vmatprep.subr.bf16.mxu0 0
      %475 = vmatpush2.bf16.msra.mxu0 %v432
      %476 = vmatprep.subr.bf16.mxu0 0
      %477 = vmatpush2.bf16.msra.mxu0 %v431
      %478 = vmatprep.subr.bf16.mxu0 0
      %479 = vmatpush2.bf16.msra.mxu0 %v430
      %480 = vmatprep.subr.bf16.mxu0 0
      %481 = vmatpush2.bf16.msra.mxu0 %v429
      %482 = vmatprep.subr.bf16.mxu0 0
      %483 = vmatpush2.bf16.msra.mxu0 %v428
      %484 = vmatprep.mubr.bf16.mxu0 %v316
      %485 = vmatmul.mubr.bf16.gmra.mxu0 %v315
      %v486 = vpop.f32.mrf.mxu0
      %v487 = vadd.f32 %v354, %v486
      %v488 = vpop.f32.mrf.mxu0
      %v489 = vpop.f32.mrf.mxu0
      %v490 = vadd.f32 %v354, %v489
      %v491 = vpop.f32.mrf.mxu0
      %492 = vdwg.mxu0
      %v493 = vmax.f32 %v487, 0.0
      %v494 = vmax.f32 %v490, 0.0
      %v495 = vpack.c.bf16 %v494, %v493
      %v496 = vld [vmem:[#allocation11] sm:$0xff]
      %v497 = vld [vmem:[#allocation11 + $0x8] sm:$0xff]
      %v498 = vld [vmem:[#allocation11 + $0x10] sm:$0xff]
      %v499 = vld [vmem:[#allocation11 + $0x18] sm:$0xff]
      %v500 = vld [vmem:[#allocation11 + $0x20] sm:$0xff]
      %v501 = vld [vmem:[#allocation11 + $0x28] sm:$0xff]
      %v502 = vld [vmem:[#allocation11 + $0x30] sm:$0xff]
      %v503 = vld [vmem:[#allocation11 + $0x38] sm:$0xff]
      %v504 = vld [vmem:[#allocation11 + $0x40] sm:$0xff]
      %v505 = vld [vmem:[#allocation11 + $0x48] sm:$0xff]
      %v506 = vld [vmem:[#allocation11 + $0x50] sm:$0xff]
      %v507 = vld [vmem:[#allocation11 + $0x58] sm:$0xff]
      %v508 = vld [vmem:[#allocation11 + $0x60] sm:$0xff]
      %v509 = vld [vmem:[#allocation11 + $0x68] sm:$0xff]
      %v510 = vld [vmem:[#allocation11 + $0x70] sm:$0xff]
      %v511 = vld [vmem:[#allocation11 + $0x78] sm:$0xff]
      %v512 = vld [vmem:[%s7] sm:$0x3]
      %v514 = vlaneseq
      %v515 = vshrl.u32 %v514, 7
      %v516 = vsub.s32 0, %v515
      %v517 = vrot.slane %v512, %v516
      %v518 = vlaneseq
      %v519 = vshrl.u32 %v518, 7
      %v520 = vsub.s32 1, %v519
      %v521 = vrot.slane %v512, %v520
      %v540 = vunpack.c.l.b16 %v496
      %v541 = vunpack.c.h.b16 %v496
      %v542 = vunpack.c.l.b16 %v497
      %v543 = vunpack.c.h.b16 %v497
      %v544 = vunpack.c.l.b16 %v498
      %v545 = vunpack.c.h.b16 %v498
      %v546 = vunpack.c.l.b16 %v499
      %v547 = vunpack.c.h.b16 %v499
      %v548 = vunpack.c.l.b16 %v500
      %v549 = vunpack.c.h.b16 %v500
      %v550 = vunpack.c.l.b16 %v501
      %v551 = vunpack.c.h.b16 %v501
      %v552 = vunpack.c.l.b16 %v502
      %v553 = vunpack.c.h.b16 %v502
      %v554 = vunpack.c.l.b16 %v503
      %v555 = vunpack.c.h.b16 %v503
      %v556 = vunpack.c.l.b16 %v504
      %v557 = vunpack.c.h.b16 %v504
      %v558 = vunpack.c.l.b16 %v505
      %v559 = vunpack.c.h.b16 %v505
      %v560 = vunpack.c.l.b16 %v506
      %v561 = vunpack.c.h.b16 %v506
      %v562 = vunpack.c.l.b16 %v507
      %v563 = vunpack.c.h.b16 %v507
      %v564 = vunpack.c.l.b16 %v508
      %v565 = vunpack.c.h.b16 %v508
      %v566 = vunpack.c.l.b16 %v509
      %v567 = vunpack.c.h.b16 %v509
      %v568 = vunpack.c.l.b16 %v510
      %v569 = vunpack.c.h.b16 %v510
      %v570 = vunpack.c.l.b16 %v511
      %v571 = vunpack.c.h.b16 %v511
      %v572 = vpack.c.b16 %v542, %v540
      %v573 = vpack.c.b16 %v543, %v541
      %v574 = vpack.c.b16 %v546, %v544
      %v575 = vpack.c.b16 %v547, %v545
      %v576 = vpack.c.b16 %v550, %v548
      %v577 = vpack.c.b16 %v551, %v549
      %v578 = vpack.c.b16 %v554, %v552
      %v579 = vpack.c.b16 %v555, %v553
      %v580 = vpack.c.b16 %v558, %v556
      %v581 = vpack.c.b16 %v559, %v557
      %v582 = vpack.c.b16 %v562, %v560
      %v583 = vpack.c.b16 %v563, %v561
      %v584 = vpack.c.b16 %v566, %v564
      %v585 = vpack.c.b16 %v567, %v565
      %v586 = vpack.c.b16 %v570, %v568
      %v587 = vpack.c.b16 %v571, %v569
      %604 = vmatprep.subr.bf16.mxu0 %v587
      %605 = vmatpush1.bf16.msra.mxu0 %v586
      %606 = vmatprep.subr.bf16.mxu0 %v585
      %607 = vmatpush1.bf16.msra.mxu0 %v584
      %608 = vmatprep.subr.bf16.mxu0 %v583
      %609 = vmatpush1.bf16.msra.mxu0 %v582
      %610 = vmatprep.subr.bf16.mxu0 %v581
      %611 = vmatpush1.bf16.msra.mxu0 %v580
      %612 = vmatprep.subr.bf16.mxu0 %v579
      %613 = vmatpush1.bf16.msra.mxu0 %v578
      %614 = vmatprep.subr.bf16.mxu0 %v577
      %615 = vmatpush1.bf16.msra.mxu0 %v576
      %616 = vmatprep.subr.bf16.mxu0 %v575
      %617 = vmatpush1.bf16.msra.mxu0 %v574
      %618 = vmatprep.subr.bf16.mxu0 %v573
      %619 = vmatpush1.bf16.msra.mxu0 %v572
      %620 = vmatprep.subr.bf16.mxu0 0
      %621 = vmatpush2.bf16.msra.mxu0 0
      %622 = vmatprep.subr.bf16.mxu0 0
      %623 = vmatpush2.bf16.msra.mxu0 0
      %624 = vmatprep.subr.bf16.mxu0 0
      %625 = vmatpush2.bf16.msra.mxu0 0
      %626 = vmatprep.subr.bf16.mxu0 0
      %627 = vmatpush2.bf16.msra.mxu0 0
      %628 = vmatprep.subr.bf16.mxu0 0
      %629 = vmatpush2.bf16.msra.mxu0 0
      %630 = vmatprep.subr.bf16.mxu0 0
      %631 = vmatpush2.bf16.msra.mxu0 0
      %632 = vmatprep.subr.bf16.mxu0 0
      %633 = vmatpush2.bf16.msra.mxu0 0
      %634 = vmatprep.subr.bf16.mxu0 0
      %635 = vmatpush2.bf16.msra.mxu0 0
      %636 = vmatprep.mubr.bf16.mxu0 0
      %637 = vmatmul.mubr.bf16.gmra.mxu0 %v495
      %v638 = vpop.f32.mrf.mxu0
      %v639 = vadd.f32 %v517, %v638
      %v640 = vpop.f32.mrf.mxu0
      %v641 = vadd.f32 %v521, %v640
      %v642 = vpop.f32.mrf.mxu0
      %v643 = vadd.f32 %v517, %v642
      %v644 = vpop.f32.mrf.mxu0
      %v645 = vadd.f32 %v521, %v644
      %646 = vdwg.mxu0
      %v647 = vmax.f32 %v639, 0.0
      %v648 = vmax.f32 %v641, 0.0
      %v649 = vmax.f32 %v643, 0.0
      %v650 = vmax.f32 %v645, 0.0
      %v651 = vpack.c.bf16 %v649, %v647
      %v652 = vpack.c.bf16 %v650, %v648
      %v653 = vld [vmem:[#allocation12] sm:$0xff]
      %v654 = vld [vmem:[#allocation12 + $0x8] sm:$0xff]
      %v655 = vld [vmem:[#allocation12 + $0x10] sm:$0xff]
      %v656 = vld [vmem:[#allocation12 + $0x18] sm:$0xff]
      %v657 = vld [vmem:[#allocation12 + $0x20] sm:$0xff]
      %v658 = vld [vmem:[#allocation12 + $0x28] sm:$0xff]
      %v659 = vld [vmem:[#allocation12 + $0x30] sm:$0xff]
      %v660 = vld [vmem:[#allocation12 + $0x38] sm:$0xff]
      %v661 = vld [vmem:[#allocation12 + $0x40] sm:$0xff]
      %v662 = vld [vmem:[#allocation12 + $0x48] sm:$0xff]
      %v663 = vld [vmem:[#allocation12 + $0x50] sm:$0xff]
      %v664 = vld [vmem:[#allocation12 + $0x58] sm:$0xff]
      %v665 = vld [vmem:[#allocation12 + $0x60] sm:$0xff]
      %v666 = vld [vmem:[#allocation12 + $0x68] sm:$0xff]
      %v667 = vld [vmem:[#allocation12 + $0x70] sm:$0xff]
      %v668 = vld [vmem:[#allocation12 + $0x78] sm:$0xff]
      %v669 = vld [vmem:[#allocation12 + $0x80] sm:$0xff]
      %v670 = vld [vmem:[#allocation12 + $0x88] sm:$0xff]
      %v671 = vld [vmem:[#allocation12 + $0x90] sm:$0xff]
      %v672 = vld [vmem:[#allocation12 + $0x98] sm:$0xff]
      %v673 = vld [vmem:[#allocation12 + $0xa0] sm:$0xff]
      %v674 = vld [vmem:[#allocation12 + $0xa8] sm:$0xff]
      %v675 = vld [vmem:[#allocation12 + $0xb0] sm:$0xff]
      %v676 = vld [vmem:[#allocation12 + $0xb8] sm:$0xff]
      %v677 = vld [vmem:[#allocation12 + $0xc0] sm:$0xff]
      %v678 = vld [vmem:[#allocation12 + $0xc8] sm:$0xff]
      %v679 = vld [vmem:[#allocation12 + $0xd0] sm:$0xff]
      %v680 = vld [vmem:[#allocation12 + $0xd8] sm:$0xff]
      %v681 = vld [vmem:[#allocation12 + $0xe0] sm:$0xff]
      %v682 = vld [vmem:[#allocation12 + $0xe8] sm:$0xff]
      %v683 = vld [vmem:[#allocation12 + $0xf0] sm:$0xff]
      %v684 = vld [vmem:[#allocation12 + $0xf8] sm:$0xff]
      %v685 = vld [vmem:[%s9] sm:$0x3]
      %v687 = vlaneseq
      %v688 = vshrl.u32 %v687, 7
      %v689 = vsub.s32 0, %v688
      %v690 = vrot.slane %v685, %v689
      %v691 = vlaneseq
      %v692 = vshrl.u32 %v691, 7
      %v693 = vsub.s32 1, %v692
      %v694 = vrot.slane %v685, %v693
      %v729 = vunpack.c.l.b16 %v653
      %v730 = vunpack.c.h.b16 %v653
      %v731 = vunpack.c.l.b16 %v654
      %v732 = vunpack.c.h.b16 %v654
      %v733 = vunpack.c.l.b16 %v655
      %v734 = vunpack.c.h.b16 %v655
      %v735 = vunpack.c.l.b16 %v656
      %v736 = vunpack.c.h.b16 %v656
      %v737 = vunpack.c.l.b16 %v657
      %v738 = vunpack.c.h.b16 %v657
      %v739 = vunpack.c.l.b16 %v658
      %v740 = vunpack.c.h.b16 %v658
      %v741 = vunpack.c.l.b16 %v659
      %v742 = vunpack.c.h.b16 %v659
      %v743 = vunpack.c.l.b16 %v660
      %v744 = vunpack.c.h.b16 %v660
      %v745 = vunpack.c.l.b16 %v661
      %v746 = vunpack.c.h.b16 %v661
      %v747 = vunpack.c.l.b16 %v662
      %v748 = vunpack.c.h.b16 %v662
      %v749 = vunpack.c.l.b16 %v663
      %v750 = vunpack.c.h.b16 %v663
      %v751 = vunpack.c.l.b16 %v664
      %v752 = vunpack.c.h.b16 %v664
      %v753 = vunpack.c.l.b16 %v665
      %v754 = vunpack.c.h.b16 %v665
      %v755 = vunpack.c.l.b16 %v666
      %v756 = vunpack.c.h.b16 %v666
      %v757 = vunpack.c.l.b16 %v667
      %v758 = vunpack.c.h.b16 %v667
      %v759 = vunpack.c.l.b16 %v668
      %v760 = vunpack.c.h.b16 %v668
      %v761 = vunpack.c.l.b16 %v669
      %v762 = vunpack.c.h.b16 %v669
      %v763 = vunpack.c.l.b16 %v670
      %v764 = vunpack.c.h.b16 %v670
      %v765 = vunpack.c.l.b16 %v671
      %v766 = vunpack.c.h.b16 %v671
      %v767 = vunpack.c.l.b16 %v672
      %v768 = vunpack.c.h.b16 %v672
      %v769 = vunpack.c.l.b16 %v673
      %v770 = vunpack.c.h.b16 %v673
      %v771 = vunpack.c.l.b16 %v674
      %v772 = vunpack.c.h.b16 %v674
      %v773 = vunpack.c.l.b16 %v675
      %v774 = vunpack.c.h.b16 %v675
      %v775 = vunpack.c.l.b16 %v676
      %v776 = vunpack.c.h.b16 %v676
      %v777 = vunpack.c.l.b16 %v677
      %v778 = vunpack.c.h.b16 %v677
      %v779 = vunpack.c.l.b16 %v678
      %v780 = vunpack.c.h.b16 %v678
      %v781 = vunpack.c.l.b16 %v679
      %v782 = vunpack.c.h.b16 %v679
      %v783 = vunpack.c.l.b16 %v680
      %v784 = vunpack.c.h.b16 %v680
      %v785 = vunpack.c.l.b16 %v681
      %v786 = vunpack.c.h.b16 %v681
      %v787 = vunpack.c.l.b16 %v682
      %v788 = vunpack.c.h.b16 %v682
      %v789 = vunpack.c.l.b16 %v683
      %v790 = vunpack.c.h.b16 %v683
      %v791 = vunpack.c.l.b16 %v684
      %v792 = vunpack.c.h.b16 %v684
      %v793 = vpack.c.b16 %v731, %v729
      %v794 = vpack.c.b16 %v732, %v730
      %v795 = vpack.c.b16 %v735, %v733
      %v796 = vpack.c.b16 %v736, %v734
      %v797 = vpack.c.b16 %v739, %v737
      %v798 = vpack.c.b16 %v740, %v738
      %v799 = vpack.c.b16 %v743, %v741
      %v800 = vpack.c.b16 %v744, %v742
      %v801 = vpack.c.b16 %v747, %v745
      %v802 = vpack.c.b16 %v748, %v746
      %v803 = vpack.c.b16 %v751, %v749
      %v804 = vpack.c.b16 %v752, %v750
      %v805 = vpack.c.b16 %v755, %v753
      %v806 = vpack.c.b16 %v756, %v754
      %v807 = vpack.c.b16 %v759, %v757
      %v808 = vpack.c.b16 %v760, %v758
      %v809 = vpack.c.b16 %v763, %v761
      %v810 = vpack.c.b16 %v764, %v762
      %v811 = vpack.c.b16 %v767, %v765
      %v812 = vpack.c.b16 %v768, %v766
      %v813 = vpack.c.b16 %v771, %v769
      %v814 = vpack.c.b16 %v772, %v770
      %v815 = vpack.c.b16 %v775, %v773
      %v816 = vpack.c.b16 %v776, %v774
      %v817 = vpack.c.b16 %v779, %v777
      %v818 = vpack.c.b16 %v780, %v778
      %v819 = vpack.c.b16 %v783, %v781
      %v820 = vpack.c.b16 %v784, %v782
      %v821 = vpack.c.b16 %v787, %v785
      %v822 = vpack.c.b16 %v788, %v786
      %v823 = vpack.c.b16 %v791, %v789
      %v824 = vpack.c.b16 %v792, %v790
      %857 = vmatprep.subr.bf16.mxu0 %v808
      %858 = vmatpush1.bf16.msra.mxu0 %v807
      %859 = vmatprep.subr.bf16.mxu0 %v806
      %860 = vmatpush1.bf16.msra.mxu0 %v805
      %861 = vmatprep.subr.bf16.mxu0 %v804
      %862 = vmatpush1.bf16.msra.mxu0 %v803
      %863 = vmatprep.subr.bf16.mxu0 %v802
      %864 = vmatpush1.bf16.msra.mxu0 %v801
      %865 = vmatprep.subr.bf16.mxu0 %v800
      %866 = vmatpush1.bf16.msra.mxu0 %v799
      %867 = vmatprep.subr.bf16.mxu0 %v798
      %868 = vmatpush1.bf16.msra.mxu0 %v797
      %869 = vmatprep.subr.bf16.mxu0 %v796
      %870 = vmatpush1.bf16.msra.mxu0 %v795
      %871 = vmatprep.subr.bf16.mxu0 %v794
      %872 = vmatpush1.bf16.msra.mxu0 %v793
      %873 = vmatprep.subr.bf16.mxu0 %v824
      %874 = vmatpush2.bf16.msra.mxu0 %v823
      %875 = vmatprep.subr.bf16.mxu0 %v822
      %876 = vmatpush2.bf16.msra.mxu0 %v821
      %877 = vmatprep.subr.bf16.mxu0 %v820
      %878 = vmatpush2.bf16.msra.mxu0 %v819
      %879 = vmatprep.subr.bf16.mxu0 %v818
      %880 = vmatpush2.bf16.msra.mxu0 %v817
      %881 = vmatprep.subr.bf16.mxu0 %v816
      %882 = vmatpush2.bf16.msra.mxu0 %v815
      %883 = vmatprep.subr.bf16.mxu0 %v814
      %884 = vmatpush2.bf16.msra.mxu0 %v813
      %885 = vmatprep.subr.bf16.mxu0 %v812
      %886 = vmatpush2.bf16.msra.mxu0 %v811
      %887 = vmatprep.subr.bf16.mxu0 %v810
      %888 = vmatpush2.bf16.msra.mxu0 %v809
      %889 = vmatprep.mubr.bf16.mxu0 %v652
      %890 = vmatmul.mubr.bf16.gmra.mxu0 %v651
      %v891 = vpop.f32.mrf.mxu0
      %v892 = vadd.f32 %v690, %v891
      %v893 = vpop.f32.mrf.mxu0
      %v894 = vadd.f32 %v694, %v893
      %v895 = vpop.f32.mrf.mxu0
      %v896 = vadd.f32 %v690, %v895
      %v897 = vpop.f32.mrf.mxu0
      %v898 = vadd.f32 %v694, %v897
      %899 = vdwg.mxu0
      %v900 = vmax.f32 %v892, 0.0
      %v901 = vmax.f32 %v894, 0.0
      %v902 = vmax.f32 %v896, 0.0
      %v903 = vmax.f32 %v898, 0.0
      %v904 = vpack.c.bf16 %v902, %v900
      %v905 = vpack.c.bf16 %v903, %v901
      %v906 = vld [vmem:[#allocation14] sm:$0xf]
      %v907 = vld [vmem:[#allocation14 + $0x4] sm:$0xf]
      %v908 = vld [vmem:[#allocation14 + $0x8] sm:$0xf]
      %v909 = vld [vmem:[#allocation14 + $0xc] sm:$0xf]
      %v910 = vld [vmem:[#allocation14 + $0x10] sm:$0xf]
      %v911 = vld [vmem:[#allocation14 + $0x14] sm:$0xf]
      %v912 = vld [vmem:[#allocation14 + $0x18] sm:$0xf]
      %v913 = vld [vmem:[#allocation14 + $0x1c] sm:$0xf]
      %v914 = vld [vmem:[#allocation14 + $0x20] sm:$0xf]
      %v915 = vld [vmem:[#allocation14 + $0x24] sm:$0xf]
      %v916 = vld [vmem:[#allocation14 + $0x28] sm:$0xf]
      %v917 = vld [vmem:[#allocation14 + $0x2c] sm:$0xf]
      %v918 = vld [vmem:[#allocation14 + $0x30] sm:$0xf]
      %v919 = vld [vmem:[#allocation14 + $0x34] sm:$0xf]
      %v920 = vld [vmem:[#allocation14 + $0x38] sm:$0xf]
      %v921 = vld [vmem:[#allocation14 + $0x3c] sm:$0xf]
      %v922 = vld [vmem:[#allocation14 + $0x40] sm:$0xf]
      %v923 = vld [vmem:[#allocation14 + $0x44] sm:$0xf]
      %v924 = vld [vmem:[#allocation14 + $0x48] sm:$0xf]
      %v925 = vld [vmem:[#allocation14 + $0x4c] sm:$0xf]
      %v926 = vld [vmem:[#allocation14 + $0x50] sm:$0xf]
      %v927 = vld [vmem:[#allocation14 + $0x54] sm:$0xf]
      %v928 = vld [vmem:[#allocation14 + $0x58] sm:$0xf]
      %v929 = vld [vmem:[#allocation14 + $0x5c] sm:$0xf]
      %v930 = vld [vmem:[#allocation14 + $0x60] sm:$0xf]
      %v931 = vld [vmem:[#allocation14 + $0x64] sm:$0xf]
      %v932 = vld [vmem:[#allocation14 + $0x68] sm:$0xf]
      %v933 = vld [vmem:[#allocation14 + $0x6c] sm:$0xf]
      %v934 = vld [vmem:[#allocation14 + $0x70] sm:$0xf]
      %v935 = vld [vmem:[#allocation14 + $0x74] sm:$0xf]
      %v936 = vld [vmem:[#allocation14 + $0x78] sm:$0xf]
      %v937 = vld [vmem:[#allocation14 + $0x7c] sm:$0xf]
      %v938 = vld [vmem:[%s11] sm:$0x1]
      %v940 = vlaneseq
      %v941 = vshrl.u32 %v940, 7
      %v942 = vsub.s32 0, %v941
      %v943 = vrot.slane %v938, %v942
      %v977 = vunpack.c.l.b16 %v906
      %v978 = vunpack.c.l.b16 %v907
      %v979 = vunpack.c.l.b16 %v908
      %v980 = vunpack.c.l.b16 %v909
      %v981 = vunpack.c.l.b16 %v910
      %v982 = vunpack.c.l.b16 %v911
      %v983 = vunpack.c.l.b16 %v912
      %v984 = vunpack.c.l.b16 %v913
      %v985 = vunpack.c.l.b16 %v914
      %v986 = vunpack.c.l.b16 %v915
      %v987 = vunpack.c.l.b16 %v916
      %v988 = vunpack.c.l.b16 %v917
      %v989 = vunpack.c.l.b16 %v918
      %v990 = vunpack.c.l.b16 %v919
      %v991 = vunpack.c.l.b16 %v920
      %v992 = vunpack.c.l.b16 %v921
      %v993 = vunpack.c.l.b16 %v922
      %v994 = vunpack.c.l.b16 %v923
      %v995 = vunpack.c.l.b16 %v924
      %v996 = vunpack.c.l.b16 %v925
      %v997 = vunpack.c.l.b16 %v926
      %v998 = vunpack.c.l.b16 %v927
      %v999 = vunpack.c.l.b16 %v928
      %v1000 = vunpack.c.l.b16 %v929
      %v1001 = vunpack.c.l.b16 %v930
      %v1002 = vunpack.c.l.b16 %v931
      %v1003 = vunpack.c.l.b16 %v932
      %v1004 = vunpack.c.l.b16 %v933
      %v1005 = vunpack.c.l.b16 %v934
      %v1006 = vunpack.c.l.b16 %v935
      %v1007 = vunpack.c.l.b16 %v936
      %v1008 = vunpack.c.l.b16 %v937
      %v1009 = vpack.c.b16 %v978, %v977
      %v1010 = vpack.c.b16 %v980, %v979
      %v1011 = vpack.c.b16 %v982, %v981
      %v1012 = vpack.c.b16 %v984, %v983
      %v1013 = vpack.c.b16 %v986, %v985
      %v1014 = vpack.c.b16 %v988, %v987
      %v1015 = vpack.c.b16 %v990, %v989
      %v1016 = vpack.c.b16 %v992, %v991
      %v1017 = vpack.c.b16 %v994, %v993
      %v1018 = vpack.c.b16 %v996, %v995
      %v1019 = vpack.c.b16 %v998, %v997
      %v1020 = vpack.c.b16 %v1000, %v999
      %v1021 = vpack.c.b16 %v1002, %v1001
      %v1022 = vpack.c.b16 %v1004, %v1003
      %v1023 = vpack.c.b16 %v1006, %v1005
      %v1024 = vpack.c.b16 %v1008, %v1007
      %1041 = vmatprep.subr.bf16.mxu0 0
      %1042 = vmatpush1.bf16.msra.mxu0 %v1016
      %1043 = vmatprep.subr.bf16.mxu0 0
      %1044 = vmatpush1.bf16.msra.mxu0 %v1015
      %1045 = vmatprep.subr.bf16.mxu0 0
      %1046 = vmatpush1.bf16.msra.mxu0 %v1014
      %1047 = vmatprep.subr.bf16.mxu0 0
      %1048 = vmatpush1.bf16.msra.mxu0 %v1013
      %1049 = vmatprep.subr.bf16.mxu0 0
      %1050 = vmatpush1.bf16.msra.mxu0 %v1012
      %1051 = vmatprep.subr.bf16.mxu0 0
      %1052 = vmatpush1.bf16.msra.mxu0 %v1011
      %1053 = vmatprep.subr.bf16.mxu0 0
      %1054 = vmatpush1.bf16.msra.mxu0 %v1010
      %1055 = vmatprep.subr.bf16.mxu0 0
      %1056 = vmatpush1.bf16.msra.mxu0 %v1009
      %1057 = vmatprep.subr.bf16.mxu0 0
      %1058 = vmatpush2.bf16.msra.mxu0 %v1024
      %1059 = vmatprep.subr.bf16.mxu0 0
      %1060 = vmatpush2.bf16.msra.mxu0 %v1023
      %1061 = vmatprep.subr.bf16.mxu0 0
      %1062 = vmatpush2.bf16.msra.mxu0 %v1022
      %1063 = vmatprep.subr.bf16.mxu0 0
      %1064 = vmatpush2.bf16.msra.mxu0 %v1021
      %1065 = vmatprep.subr.bf16.mxu0 0
      %1066 = vmatpush2.bf16.msra.mxu0 %v1020
      %1067 = vmatprep.subr.bf16.mxu0 0
      %1068 = vmatpush2.bf16.msra.mxu0 %v1019
      %1069 = vmatprep.subr.bf16.mxu0 0
      %1070 = vmatpush2.bf16.msra.mxu0 %v1018
      %1071 = vmatprep.subr.bf16.mxu0 0
      %1072 = vmatpush2.bf16.msra.mxu0 %v1017
      %1073 = vmatprep.mubr.bf16.mxu0 %v905
      %1074 = vmatmul.mubr.bf16.gmra.mxu0 %v904
      %v1075 = vpop.f32.mrf.mxu0
      %v1076 = vadd.f32 %v943, %v1075
      %v1077 = vpop.f32.mrf.mxu0
      %v1078 = vpop.f32.mrf.mxu0
      %v1079 = vadd.f32 %v943, %v1078
      %v1080 = vpop.f32.mrf.mxu0
      %1081 = vdwg.mxu0
      %v1082 = vmax.f32 %v1076, 0.0
      %v1083 = vmax.f32 %v1079, 0.0
      %v1084 = vpack.c.bf16 %v1083, %v1082
      %v1085 = vld [vmem:[#allocation15] sm:$0xf]
      %v1086 = vld [vmem:[#allocation15 + $0x4] sm:$0xf]
      %v1087 = vld [vmem:[#allocation15 + $0x8] sm:$0xf]
      %v1088 = vld [vmem:[#allocation15 + $0xc] sm:$0xf]
      %v1089 = vld [vmem:[#allocation15 + $0x10] sm:$0xf]
      %v1090 = vld [vmem:[#allocation15 + $0x14] sm:$0xf]
      %v1091 = vld [vmem:[#allocation15 + $0x18] sm:$0xf]
      %v1092 = vld [vmem:[#allocation15 + $0x1c] sm:$0xf]
      %v1093 = vld [vmem:[#allocation15 + $0x20] sm:$0xf]
      %v1094 = vld [vmem:[#allocation15 + $0x24] sm:$0xf]
      %v1095 = vld [vmem:[#allocation15 + $0x28] sm:$0xf]
      %v1096 = vld [vmem:[#allocation15 + $0x2c] sm:$0xf]
      %v1097 = vld [vmem:[#allocation15 + $0x30] sm:$0xf]
      %v1098 = vld [vmem:[#allocation15 + $0x34] sm:$0xf]
      %v1099 = vld [vmem:[#allocation15 + $0x38] sm:$0xf]
      %v1100 = vld [vmem:[#allocation15 + $0x3c] sm:$0xf]
      %v1101 = vld [vmem:[%s13] sm:$0x1]
      %v1103 = vlaneseq
      %v1104 = vshrl.u32 %v1103, 7
      %v1105 = vsub.s32 0, %v1104
      %v1106 = vrot.slane %v1101, %v1105
      %v1124 = vunpack.c.l.b16 %v1085
      %v1125 = vunpack.c.l.b16 %v1086
      %v1126 = vunpack.c.l.b16 %v1087
      %v1127 = vunpack.c.l.b16 %v1088
      %v1128 = vunpack.c.l.b16 %v1089
      %v1129 = vunpack.c.l.b16 %v1090
      %v1130 = vunpack.c.l.b16 %v1091
      %v1131 = vunpack.c.l.b16 %v1092
      %v1132 = vunpack.c.l.b16 %v1093
      %v1133 = vunpack.c.l.b16 %v1094
      %v1134 = vunpack.c.l.b16 %v1095
      %v1135 = vunpack.c.l.b16 %v1096
      %v1136 = vunpack.c.l.b16 %v1097
      %v1137 = vunpack.c.l.b16 %v1098
      %v1138 = vunpack.c.l.b16 %v1099
      %v1139 = vunpack.c.l.b16 %v1100
      %v1140 = vpack.c.b16 %v1125, %v1124
      %v1141 = vpack.c.b16 %v1127, %v1126
      %v1142 = vpack.c.b16 %v1129, %v1128
      %v1143 = vpack.c.b16 %v1131, %v1130
      %v1144 = vpack.c.b16 %v1133, %v1132
      %v1145 = vpack.c.b16 %v1135, %v1134
      %v1146 = vpack.c.b16 %v1137, %v1136
      %v1147 = vpack.c.b16 %v1139, %v1138
      %1156 = vmatprep.subr.bf16.mxu0 0
      %1157 = vmatpush1.bf16.msra.mxu0 %v1147
      %1158 = vmatprep.subr.bf16.mxu0 0
      %1159 = vmatpush1.bf16.msra.mxu0 %v1146
      %1160 = vmatprep.subr.bf16.mxu0 0
      %1161 = vmatpush1.bf16.msra.mxu0 %v1145
      %1162 = vmatprep.subr.bf16.mxu0 0
      %1163 = vmatpush1.bf16.msra.mxu0 %v1144
      %1164 = vmatprep.subr.bf16.mxu0 0
      %1165 = vmatpush1.bf16.msra.mxu0 %v1143
      %1166 = vmatprep.subr.bf16.mxu0 0
      %1167 = vmatpush1.bf16.msra.mxu0 %v1142
      %1168 = vmatprep.subr.bf16.mxu0 0
      %1169 = vmatpush1.bf16.msra.mxu0 %v1141
      %1170 = vmatprep.subr.bf16.mxu0 0
      %1171 = vmatpush1.bf16.msra.mxu0 %v1140
      %1172 = vmatprep.subr.bf16.mxu0 0
      %1173 = vmatpush2.bf16.msra.mxu0 0
      %1174 = vmatprep.subr.bf16.mxu0 0
      %1175 = vmatpush2.bf16.msra.mxu0 0
      %1176 = vmatprep.subr.bf16.mxu0 0
      %1177 = vmatpush2.bf16.msra.mxu0 0
      %1178 = vmatprep.subr.bf16.mxu0 0
      %1179 = vmatpush2.bf16.msra.mxu0 0
      %1180 = vmatprep.subr.bf16.mxu0 0
      %1181 = vmatpush2.bf16.msra.mxu0 0
      %1182 = vmatprep.subr.bf16.mxu0 0
      %1183 = vmatpush2.bf16.msra.mxu0 0
      %1184 = vmatprep.subr.bf16.mxu0 0
      %1185 = vmatpush2.bf16.msra.mxu0 0
      %1186 = vmatprep.subr.bf16.mxu0 0
      %1187 = vmatpush2.bf16.msra.mxu0 0
      %1188 = vmatprep.mubr.bf16.mxu0 0
      %1189 = vmatmul.mubr.bf16.gmra.mxu0 %v1084
      %v1190 = vpop.f32.mrf.mxu0
      %v1191 = vadd.f32 %v1106, %v1190
      %v1192 = vpop.f32.mrf.mxu0
      %v1193 = vpop.f32.mrf.mxu0
      %v1194 = vadd.f32 %v1106, %v1193
      %v1195 = vpop.f32.mrf.mxu0
      %1196 = vdwg.mxu0
      %1197 = vst [vmem:[#allocation17] sm:$0xff] %v1191
      %1198 = vst [vmem:[#allocation17 + $0x8] sm:$0xff] %v1194
    $region97: #{tpu_custom_call.1} parent=1 // pred_fallthru
      _
    // Predicated region
    $region98: #{tpu_custom_call.1} parent=1 // pred_check
      _
    $region99: #{tpu_custom_call.1} parent=1 // pred_check_branch
      %1200 = sbr.rel (0) target = $region101
    $region100: #{tpu_custom_call.1} parent=1 // pred_region
      %s1202 = ssub.s32 256, 256
      %1203 = vsyncadd [#allocation5], %s1202
      %s1204 = sshll.u32 [#allocation17], 4
      %s1205 = int_to_ptr.vmem [resolvable:$true] %s1204
      %1210 = dma.vmem_to_hbm [thread:$0]  %s1205, 256, %s14, [#allocation5], 128, 128, 8
    $region101: #{tpu_custom_call.1} parent=1 // pred_fallthru
      _
    // Predicated region
    $region102: #{tpu_custom_call.1} parent=1 // pred_check
      _
    $region103: #{tpu_custom_call.1} parent=1 // pred_check_branch
      %1212 = sbr.rel (0) target = $region105
    $region104: #{tpu_custom_call.1} parent=1 // pred_region
      %1213 = dma.done [#allocation5], 256
    $region105: #{tpu_custom_call.1} parent=1 // pred_fallthru
      _
    %1214 = vsyncpa [#allocation4], 1
    %1215 = vsyncpa [#allocation7], 1
    %1216 = vsyncpa [#allocation10], 1
    %1217 = vsyncpa [#allocation13], 1
    %1218 = vsyncpa [#allocation16], 1
    %1219 = vsyncpa [#allocation5], 1

</llo_original>
